<compile_context>
chip_gen: v7x
topology: tpu7x:2x2x1
jax: 0.10.0
libtpu: 0.0.40
codegen_flags: <defaults>
</compile_context>

<pallas_src>
import functools

import jax
import jax.numpy as jnp
from jax import lax
from jax.experimental import pallas as pl
from jax.experimental.pallas import tpu as pltpu

LANE = 128   # lane tile
SUB = 8      # sublane tile


def _round_up(n, m):
    return ((n + m - 1) // m) * m


def _make_kernel(T, TT, TB, Hp):
    """Build the GRU+FC kernel closed over the static sizes."""

    def kernel(x_ref,      # (TT, TB, I)        input chunk, f32
               wih_ref,    # (I, 3*Hp)          W_ih^T (matmul dtype)
               bias_ref,   # (1, 3*Hp)          b_ih (+ b_hh for r,z), f32
               whh_ref,    # (Hp, 3*Hp)         W_hh^T (matmul dtype)
               bhhn_ref,   # (1, Hp)            b_hh for the n gate, f32
               fcw_ref,    # (Hp, Op)           fc.weight^T (matmul dtype)
               fcb_ref,    # (1, Op)            fc.bias, f32
               out_ref,    # (TB, Op)           f32 output block
               h_ref,      # VMEM (TB, Hp)      hidden state across chunks
               gi_ref):    # VMEM (TT*TB, 3Hp)  per-chunk input projection
        t_idx = pl.program_id(1)
        nt = pl.num_programs(1)
        I = x_ref.shape[2]

        # ---- chunk prologue: GI = x_chunk @ W_ih^T + bias  (once per chunk,
        # never round-trips through HBM).
        x2 = x_ref[...].reshape(TT * TB, I)
        if I < 16:
            # Tiny input_size: a K<16 matmul wastes the MXU; do it as a
            # lane-broadcast multiply-accumulate on the VPU instead.
            wihf = wih_ref[...].astype(jnp.float32)
            gi = jnp.broadcast_to(bias_ref[...], (TT * TB, 3 * Hp))
            for i in range(I):                        # static, tiny
                gi = gi + x2[:, i:i + 1].astype(jnp.float32) * wihf[i:i + 1, :]
        else:
            gi = jnp.dot(x2.astype(wih_ref.dtype), wih_ref[...],
                         preferred_element_type=jnp.float32) + bias_ref[...]
        gi_ref[...] = gi

        # ---- zero the hidden state at the start of each batch block's T sweep.
        @pl.when(t_idx == 0)
        def _():
            h_ref[...] = jnp.zeros_like(h_ref)

        # Hoisted loads / broadcasts (outside the recurrence).
        whh = whh_ref[...]                                   # (Hp, 3Hp)
        bhh_n = jnp.broadcast_to(bhhn_ref[...], (TB, Hp))    # (TB, Hp)
        h0 = h_ref[...]
        t_base = t_idx * TT
        mask_tail = (T % TT) != 0                            # static

        def step(t, h_prev):
            row = pl.multiple_of(t * TB, TB)
            gi_t = gi_ref[pl.ds(row, TB), :]                 # (TB, 3Hp)
            gh = jnp.dot(h_prev.astype(whh.dtype), whh,
                         preferred_element_type=jnp.float32)  # (TB, 3Hp)

            # PyTorch gate order r, z, n -- each gate on a 128-lane boundary.
            i_r = gi_t[:, 0:Hp]
            i_z = gi_t[:, Hp:2 * Hp]
            i_n = gi_t[:, 2 * Hp:3 * Hp]
            h_r = gh[:, 0:Hp]
            h_z = gh[:, Hp:2 * Hp]
            h_n = gh[:, 2 * Hp:3 * Hp] + bhh_n

            r = jax.nn.sigmoid(i_r + h_r)    # b_ih_r + b_hh_r folded into i_r
            z = jax.nn.sigmoid(i_z + h_z)    # b_ih_z + b_hh_z folded into i_z
            n = jnp.tanh(i_n + r * h_n)
            h_new = (1.0 - z) * n + z * h_prev
            if mask_tail:                    # padded tail timesteps keep h
                h_new = jnp.where(t_base + t < T, h_new, h_prev)
            return h_new

        # Bounded unroll keeps the live vreg state (gh + gates) small.
        h_last = lax.fori_loop(0, TT, step, h0, unroll=min(TT, 8))
        h_ref[...] = h_last

        # ---- final Linear on the last timestep's hidden state (lane-dense Op).
        @pl.when(t_idx == nt - 1)
        def _():
            out_ref[...] = (jnp.dot(h_last.astype(fcw_ref.dtype), fcw_ref[...],
                                    preferred_element_type=jnp.float32)
                            + fcb_ref[...])

    return kernel


def my_gru_forward(x_btI, params, *, t_chunk=128, matmul_dtype=jnp.bfloat16):
    """x_btI: (batch, time, input) f32 -> (batch, output) f32."""
    B, T, I = x_btI.shape
    H = params["whh"].shape[1]
    O = params["fcw"].shape[0]

    Hp = _round_up(max(H, LANE), LANE)     # each gate spans a full lane tile
    Op = _round_up(max(O, LANE), LANE)     # lane-dense FC output
    TB = SUB                               # batch block = one sublane tile
    Bp = _round_up(max(B, TB), TB)
    TT = min(t_chunk, T)                   # time-chunk size (VMEM budgeted)
    Tp = _round_up(T, TT)
    nb, nt = Bp // TB, Tp // TT

    # ---- weights / biases, per-gate zero-padded to Hp lanes.
    def pad_gate_cols(w_t):                # (K, 3H) -> (K, 3*Hp)
        K = w_t.shape[0]
        w3 = w_t.reshape(K, 3, H)
        return jnp.pad(w3, ((0, 0), (0, 0), (0, Hp - H))).reshape(K, 3 * Hp)

    wih_p = pad_gate_cols(params["wih"].T).astype(matmul_dtype)           # (I, 3Hp)
    whh_p = jnp.pad(pad_gate_cols(params["whh"].T),
                    ((0, Hp - H), (0, 0))).astype(matmul_dtype)           # (Hp, 3Hp)

    bih_g = params["bih"].reshape(3, H)
    bhh_g = params["bhh"].reshape(3, H)
    # Hidden biases for r/z fold into the input-side bias; the n-gate hidden
    # bias stays separate (it is gated by r).
    bias3 = jnp.stack([bih_g[0] + bhh_g[0], bih_g[1] + bhh_g[1], bih_g[2]])
    bias_comb = jnp.pad(bias3, ((0, 0), (0, Hp - H))).reshape(1, 3 * Hp)
    bias_comb = bias_comb.astype(jnp.float32)
    bhh_n = jnp.pad(bhh_g[2], (0, Hp - H)).reshape(1, Hp).astype(jnp.float32)

    fcw_p = jnp.zeros((Hp, Op), jnp.float32).at[:H, :O].set(
        params["fcw"].T).astype(matmul_dtype)
    fcb_p = jnp.zeros((1, Op), jnp.float32).at[0, :O].set(params["fcb"])

    # ---- input: (B,T,I) -> (Tp, Bp, I); batch padded to full sublane tiles,
    # time padded to whole chunks (tail masked in-kernel, stays correct).
    x_tbi = jnp.transpose(x_btI, (1, 0, 2)).astype(jnp.float32)
    x_p = jnp.pad(x_tbi, ((0, Tp - T), (0, Bp - B), (0, 0)))

    kernel = _make_kernel(T, TT, TB, Hp)

    out_p = pl.pallas_call(
        kernel,
        out_shape=jax.ShapeDtypeStruct((Bp, Op), jnp.float32),
        grid_spec=pltpu.PrefetchScalarGridSpec(
            num_scalar_prefetch=0,
            grid=(nb, nt),
            in_specs=[
                # streamed per (batch block, time chunk); double-buffered DMA
                pl.BlockSpec((TT, TB, I), lambda b, t: (t, b, 0)),
                # weights / biases: constant block index -> fetched once, resident
                pl.BlockSpec((I, 3 * Hp), lambda b, t: (0, 0)),
                pl.BlockSpec((1, 3 * Hp), lambda b, t: (0, 0)),
                pl.BlockSpec((Hp, 3 * Hp), lambda b, t: (0, 0)),
                pl.BlockSpec((1, Hp), lambda b, t: (0, 0)),
                pl.BlockSpec((Hp, Op), lambda b, t: (0, 0)),
                pl.BlockSpec((1, Op), lambda b, t: (0, 0)),
            ],
            out_specs=pl.BlockSpec((TB, Op), lambda b, t: (b, 0)),
            scratch_shapes=[
                pltpu.VMEM((TB, Hp), jnp.float32),            # hidden state
                pltpu.VMEM((TT * TB, 3 * Hp), jnp.float32),   # per-chunk GI
            ],
        ),
        compiler_params=pltpu.CompilerParams(
            # batch blocks are independent -> megacore (v7x) splits them; the
            # time axis carries the serial recurrence.
            dimension_semantics=("parallel", "arbitrary"),
            # Explicit scoped-VMEM budget: ~3 MiB used at TT=128, safe on
            # v5e / v6e / v7x.
            vmem_limit_bytes=32 * 1024 * 1024,
        ),
    )(x_p, wih_p, bias_comb, whh_p, bhh_n, fcw_p, fcb_p)

    return out_p[:B, :O]


def reference_forward(x_btI, params):
    """Pure-JAX reference reproducing nn.GRU + nn.Linear semantics."""
    x_tbi = jnp.transpose(x_btI, (1, 0, 2))
    T, B, _ = x_tbi.shape
    H = params["whh"].shape[1]
    h = jnp.zeros((B, H), jnp.float32)
    for t in range(T):
        gi = x_tbi[t] @ params["wih"].T + params["bih"]
        gh = h @ params["whh"].T + params["bhh"]
        i_r, i_z, i_n = gi[:, :H], gi[:, H:2 * H], gi[:, 2 * H:]
        h_r, h_z, h_n = gh[:, :H], gh[:, H:2 * H], gh[:, 2 * H:]
        r = jax.nn.sigmoid(i_r + h_r)
        z = jax.nn.sigmoid(i_z + h_z)
        n = jnp.tanh(i_n + r * h_n)
        h = (1.0 - z) * n + z * h
    return h @ params["fcw"].T + params["fcb"]


def init_params(key, input_size, hidden_size, output_size):
    """Deterministic init, same shapes / U(-1/sqrt(H), 1/sqrt(H)) range as PyTorch."""
    ks = jax.random.split(key, 6)
    s = 1.0 / jnp.sqrt(hidden_size)
    u = lambda k, shape: jax.random.uniform(k, shape, jnp.float32, -s, s)
    return {
        "wih": u(ks[0], (3 * hidden_size, input_size)),   # weight_ih_l0
        "whh": u(ks[1], (3 * hidden_size, hidden_size)),  # weight_hh_l0
        "bih": u(ks[2], (3 * hidden_size,)),              # bias_ih_l0
        "bhh": u(ks[3], (3 * hidden_size,)),              # bias_hh_l0
        "fcw": u(ks[4], (output_size, hidden_size)),      # fc.weight
        "fcb": u(ks[5], (output_size,)),                  # fc.bias
    }


if __name__ == "__main__":
    # Small shapes consistent with the module: input_size=1, hidden=16, output=1.
    batch, seq_len, input_size, hidden_size, output_size = 2, 8, 1, 16, 1

    key = jax.random.PRNGKey(0)
    k_x, k_p = jax.random.split(key)
    x = jax.random.normal(k_x, (batch, seq_len, input_size), jnp.float32)
    params = init_params(k_p, input_size, hidden_size, output_size)

    ref = reference_forward(x, params)

    # f32-weight config: tight check against the pure-JAX reference.
    fwd_f32 = jax.jit(functools.partial(my_gru_forward, matmul_dtype=jnp.float32))
    out_f32 = jax.block_until_ready(fwd_f32(x, params))
    assert out_f32.shape == (batch, output_size)
    assert jnp.allclose(out_f32, ref, atol=1e-5, rtol=1e-5), "f32 mismatch vs reference"

    # Default perf config (bf16 weights, f32 accumulation / gate math): looser tol.
    fwd = jax.jit(my_gru_forward)
    out = jax.block_until_ready(fwd(x, params))
    assert out.shape == (batch, output_size)
    assert jnp.allclose(out, ref, atol=5e-2, rtol=5e-2), "bf16 mismatch vs reference"

    print("KERNEL_OK")
</pallas_src>

<mosaic_0001>
module attributes {stable_mosaic.version = 11 : i64} {
  func.func @kernel(%arg0: i32, %arg1: i32, %arg2: memref<8x8x1xf32, #tpu.memory_space<vmem>>, %arg3: memref<1x384xf32, #tpu.memory_space<vmem>>, %arg4: memref<1x384xf32, #tpu.memory_space<vmem>>, %arg5: memref<128x384xf32, #tpu.memory_space<vmem>>, %arg6: memref<1x128xf32, #tpu.memory_space<vmem>>, %arg7: memref<128x128xf32, #tpu.memory_space<vmem>>, %arg8: memref<1x128xf32, #tpu.memory_space<vmem>>, %arg9: memref<8x128xf32, #tpu.memory_space<vmem>>, %arg10: memref<8x128xf32, #tpu.memory_space<vmem>>, %arg11: memref<64x384xf32, #tpu.memory_space<vmem>>) attributes {dimension_semantics = [#tpu.dimension_semantics<parallel>, #tpu.dimension_semantics<arbitrary>], iteration_bounds = array<i64: 1, 1>, scalar_prefetch = 0 : i64, scratch_operands = 2 : i64, tpu.core_type = #tpu.core_type<tc>, window_params = [{transform_indices = @transform_0, window_bounds = array<i64: 8, 8, 1>}, {pipeline_mode = #tpu.pipeline_mode<synchronous>, transform_indices = @transform_1, window_bounds = array<i64: 1, 384>}, {pipeline_mode = #tpu.pipeline_mode<synchronous>, transform_indices = @transform_2, window_bounds = array<i64: 1, 384>}, {pipeline_mode = #tpu.pipeline_mode<synchronous>, transform_indices = @transform_3, window_bounds = array<i64: 128, 384>}, {pipeline_mode = #tpu.pipeline_mode<synchronous>, transform_indices = @transform_4, window_bounds = array<i64: 1, 128>}, {pipeline_mode = #tpu.pipeline_mode<synchronous>, transform_indices = @transform_5, window_bounds = array<i64: 128, 128>}, {pipeline_mode = #tpu.pipeline_mode<synchronous>, transform_indices = @transform_6, window_bounds = array<i64: 1, 128>}, {transform_indices = @transform_7, window_bounds = array<i64: 8, 128>}]} {
    %c0 = arith.constant 0 : index
    %c0_0 = arith.constant 0 : index
    %c0_1 = arith.constant 0 : index
    %0 = vector.load %arg2[%c0, %c0_0, %c0_1] : memref<8x8x1xf32, #tpu.memory_space<vmem>>, vector<8x8x1xf32>
    %1 = vector.shape_cast %0 : vector<8x8x1xf32> to vector<64x1xf32>
    %c0_2 = arith.constant 0 : index
    %c0_3 = arith.constant 0 : index
    %2 = vector.load %arg3[%c0_2, %c0_3] : memref<1x384xf32, #tpu.memory_space<vmem>>, vector<1x384xf32>
    %c0_4 = arith.constant 0 : index
    %c0_5 = arith.constant 0 : index
    %3 = vector.load %arg4[%c0_4, %c0_5] : memref<1x384xf32, #tpu.memory_space<vmem>>, vector<1x384xf32>
    %4 = vector.shape_cast %3 : vector<1x384xf32> to vector<1x384xf32>
    %5 = vector.broadcast %4 : vector<1x384xf32> to vector<64x384xf32>
    %6 = vector.broadcast %1 : vector<64x1xf32> to vector<64x384xf32>
    %7 = vector.broadcast %2 : vector<1x384xf32> to vector<64x384xf32>
    %8 = arith.mulf %6, %7 : vector<64x384xf32>
    %9 = arith.addf %5, %8 : vector<64x384xf32>
    %c0_6 = arith.constant 0 : index
    %c0_7 = arith.constant 0 : index
    %10 = vector.load %arg11[%c0_6, %c0_7] : memref<64x384xf32, #tpu.memory_space<vmem>>, vector<64x384xf32>
    tpu.vector_store %arg11[%c0_6, %c0_7], %9 {strides = array<i32>} : memref<64x384xf32, #tpu.memory_space<vmem>>, vector<64x384xf32>,
    %c0_i32 = arith.constant 0 : i32
    %11 = arith.cmpi eq, %arg1, %c0_i32 : i32
    %12 = arith.extui %11 : i1 to i32
    %c0_i32_8 = arith.constant 0 : i32
    %13 = arith.cmpi ne, %12, %c0_i32_8 : i32
    scf.if %13 {
      %cst_67 = arith.constant 0.000000e+00 : f32
      %279 = vector.broadcast %cst_67 : f32 to vector<8x128xf32>
      %c0_68 = arith.constant 0 : index
      %c0_69 = arith.constant 0 : index
      %280 = vector.load %arg10[%c0_68, %c0_69] : memref<8x128xf32, #tpu.memory_space<vmem>>, vector<8x128xf32>
      tpu.vector_store %arg10[%c0_68, %c0_69], %279 {strides = array<i32>} : memref<8x128xf32, #tpu.memory_space<vmem>>, vector<8x128xf32>,
    } else {
    }
    %c0_9 = arith.constant 0 : index
    %c0_10 = arith.constant 0 : index
    %14 = vector.load %arg5[%c0_9, %c0_10] : memref<128x384xf32, #tpu.memory_space<vmem>>, vector<128x384xf32>
    %c0_11 = arith.constant 0 : index
    %c0_12 = arith.constant 0 : index
    %15 = vector.load %arg6[%c0_11, %c0_12] : memref<1x128xf32, #tpu.memory_space<vmem>>, vector<1x128xf32>
    %16 = vector.shape_cast %15 : vector<1x128xf32> to vector<1x128xf32>
    %17 = vector.broadcast %16 : vector<1x128xf32> to vector<8x128xf32>
    %c0_13 = arith.constant 0 : index
    %c0_14 = arith.constant 0 : index
    %18 = vector.load %arg10[%c0_13, %c0_14] : memref<8x128xf32, #tpu.memory_space<vmem>>, vector<8x128xf32>
    %c0_i32_15 = arith.constant 0 : i32
    %c8_i32 = arith.constant 8 : i32
    %19 = arith.muli %c0_i32_15, %c8_i32 : i32
    %20 = tpu.assume_multiple %19, 8 : i32
    %21 = arith.index_cast %20 : i32 to index
    %c0_16 = arith.constant 0 : index
    %22 = vector.load %arg11[%21, %c0_16] : memref<64x384xf32, #tpu.memory_space<vmem>>, vector<8x384xf32>
    %cst = arith.constant dense<0.000000e+00> : vector<8x384xf32>
    %23 = tpu.matmul %18, %14, %cst {dimension_numbers = #tpu.dot_dimension_numbers<[1], [0], [0], [1], [0, 0, 1, 1], [], []>} : vector<8x128xf32>, vector<128x384xf32>, vector<8x384xf32> -> vector<8x384xf32>
    %24 = vector.extract_strided_slice %22 {offsets = [0, 0], sizes = [8, 128], strides = [1, 1]} : vector<8x384xf32> to vector<8x128xf32>
    %25 = vector.extract_strided_slice %22 {offsets = [0, 128], sizes = [8, 128], strides = [1, 1]} : vector<8x384xf32> to vector<8x128xf32>
    %26 = vector.extract_strided_slice %22 {offsets = [0, 256], sizes = [8, 128], strides = [1, 1]} : vector<8x384xf32> to vector<8x128xf32>
    %27 = vector.extract_strided_slice %23 {offsets = [0, 0], sizes = [8, 128], strides = [1, 1]} : vector<8x384xf32> to vector<8x128xf32>
    %28 = vector.extract_strided_slice %23 {offsets = [0, 128], sizes = [8, 128], strides = [1, 1]} : vector<8x384xf32> to vector<8x128xf32>
    %29 = vector.extract_strided_slice %23 {offsets = [0, 256], sizes = [8, 128], strides = [1, 1]} : vector<8x384xf32> to vector<8x128xf32>
    %30 = arith.addf %29, %17 : vector<8x128xf32>
    %31 = arith.addf %24, %27 : vector<8x128xf32>
    %32 = arith.negf %31 : vector<8x128xf32>
    %33 = math.exp %32 : vector<8x128xf32>
    %cst_17 = arith.constant 1.000000e+00 : f32
    %34 = vector.broadcast %cst_17 : f32 to vector<8x128xf32>
    %35 = arith.addf %34, %33 : vector<8x128xf32>
    %36 = arith.divf %34, %35 : vector<8x128xf32>
    %37 = arith.addf %25, %28 : vector<8x128xf32>
    %38 = arith.negf %37 : vector<8x128xf32>
    %39 = math.exp %38 : vector<8x128xf32>
    %cst_18 = arith.constant 1.000000e+00 : f32
    %40 = vector.broadcast %cst_18 : f32 to vector<8x128xf32>
    %41 = arith.addf %40, %39 : vector<8x128xf32>
    %42 = arith.divf %40, %41 : vector<8x128xf32>
    %43 = arith.mulf %36, %30 : vector<8x128xf32>
    %44 = arith.addf %26, %43 : vector<8x128xf32>
    %45 = math.tanh %44 : vector<8x128xf32>
    %cst_19 = arith.constant 1.000000e+00 : f32
    %46 = vector.broadcast %cst_19 : f32 to vector<8x128xf32>
    %47 = arith.subf %46, %42 : vector<8x128xf32>
    %48 = arith.mulf %47, %45 : vector<8x128xf32>
    %49 = arith.mulf %42, %18 : vector<8x128xf32>
    %50 = arith.addf %48, %49 : vector<8x128xf32>
    %c1_i32 = arith.constant 1 : i32
    %c8_i32_20 = arith.constant 8 : i32
    %51 = arith.muli %c1_i32, %c8_i32_20 : i32
    %52 = tpu.assume_multiple %51, 8 : i32
    %53 = arith.index_cast %52 : i32 to index
    %c0_21 = arith.constant 0 : index
    %54 = vector.load %arg11[%53, %c0_21] : memref<64x384xf32, #tpu.memory_space<vmem>>, vector<8x384xf32>
    %cst_22 = arith.constant dense<0.000000e+00> : vector<8x384xf32>
    %55 = tpu.matmul %50, %14, %cst_22 {dimension_numbers = #tpu.dot_dimension_numbers<[1], [0], [0], [1], [0, 0, 1, 1], [], []>} : vector<8x128xf32>, vector<128x384xf32>, vector<8x384xf32> -> vector<8x384xf32>
    %56 = vector.extract_strided_slice %54 {offsets = [0, 0], sizes = [8, 128], strides = [1, 1]} : vector<8x384xf32> to vector<8x128xf32>
    %57 = vector.extract_strided_slice %54 {offsets = [0, 128], sizes = [8, 128], strides = [1, 1]} : vector<8x384xf32> to vector<8x128xf32>
    %58 = vector.extract_strided_slice %54 {offsets = [0, 256], sizes = [8, 128], strides = [1, 1]} : vector<8x384xf32> to vector<8x128xf32>
    %59 = vector.extract_strided_slice %55 {offsets = [0, 0], sizes = [8, 128], strides = [1, 1]} : vector<8x384xf32> to vector<8x128xf32>
    %60 = vector.extract_strided_slice %55 {offsets = [0, 128], sizes = [8, 128], strides = [1, 1]} : vector<8x384xf32> to vector<8x128xf32>
    %61 = vector.extract_strided_slice %55 {offsets = [0, 256], sizes = [8, 128], strides = [1, 1]} : vector<8x384xf32> to vector<8x128xf32>
    %62 = arith.addf %61, %17 : vector<8x128xf32>
    %63 = arith.addf %56, %59 : vector<8x128xf32>
    %64 = arith.negf %63 : vector<8x128xf32>
    %65 = math.exp %64 : vector<8x128xf32>
    %cst_23 = arith.constant 1.000000e+00 : f32
    %66 = vector.broadcast %cst_23 : f32 to vector<8x128xf32>
    %67 = arith.addf %66, %65 : vector<8x128xf32>
    %68 = arith.divf %66, %67 : vector<8x128xf32>
    %69 = arith.addf %57, %60 : vector<8x128xf32>
    %70 = arith.negf %69 : vector<8x128xf32>
    %71 = math.exp %70 : vector<8x128xf32>
    %cst_24 = arith.constant 1.000000e+00 : f32
    %72 = vector.broadcast %cst_24 : f32 to vector<8x128xf32>
    %73 = arith.addf %72, %71 : vector<8x128xf32>
    %74 = arith.divf %72, %73 : vector<8x128xf32>
    %75 = arith.mulf %68, %62 : vector<8x128xf32>
    %76 = arith.addf %58, %75 : vector<8x128xf32>
    %77 = math.tanh %76 : vector<8x128xf32>
    %cst_25 = arith.constant 1.000000e+00 : f32
    %78 = vector.broadcast %cst_25 : f32 to vector<8x128xf32>
    %79 = arith.subf %78, %74 : vector<8x128xf32>
    %80 = arith.mulf %79, %77 : vector<8x128xf32>
    %81 = arith.mulf %74, %50 : vector<8x128xf32>
    %82 = arith.addf %80, %81 : vector<8x128xf32>
    %c2_i32 = arith.constant 2 : i32
    %c8_i32_26 = arith.constant 8 : i32
    %83 = arith.muli %c2_i32, %c8_i32_26 : i32
    %84 = tpu.assume_multiple %83, 8 : i32
    %85 = arith.index_cast %84 : i32 to index
    %c0_27 = arith.constant 0 : index
    %86 = vector.load %arg11[%85, %c0_27] : memref<64x384xf32, #tpu.memory_space<vmem>>, vector<8x384xf32>
    %cst_28 = arith.constant dense<0.000000e+00> : vector<8x384xf32>
    %87 = tpu.matmul %82, %14, %cst_28 {dimension_numbers = #tpu.dot_dimension_numbers<[1], [0], [0], [1], [0, 0, 1, 1], [], []>} : vector<8x128xf32>, vector<128x384xf32>, vector<8x384xf32> -> vector<8x384xf32>
    %88 = vector.extract_strided_slice %86 {offsets = [0, 0], sizes = [8, 128], strides = [1, 1]} : vector<8x384xf32> to vector<8x128xf32>
    %89 = vector.extract_strided_slice %86 {offsets = [0, 128], sizes = [8, 128], strides = [1, 1]} : vector<8x384xf32> to vector<8x128xf32>
    %90 = vector.extract_strided_slice %86 {offsets = [0, 256], sizes = [8, 128], strides = [1, 1]} : vector<8x384xf32> to vector<8x128xf32>
    %91 = vector.extract_strided_slice %87 {offsets = [0, 0], sizes = [8, 128], strides = [1, 1]} : vector<8x384xf32> to vector<8x128xf32>
    %92 = vector.extract_strided_slice %87 {offsets = [0, 128], sizes = [8, 128], strides = [1, 1]} : vector<8x384xf32> to vector<8x128xf32>
    %93 = vector.extract_strided_slice %87 {offsets = [0, 256], sizes = [8, 128], strides = [1, 1]} : vector<8x384xf32> to vector<8x128xf32>
    %94 = arith.addf %93, %17 : vector<8x128xf32>
    %95 = arith.addf %88, %91 : vector<8x128xf32>
    %96 = arith.negf %95 : vector<8x128xf32>
    %97 = math.exp %96 : vector<8x128xf32>
    %cst_29 = arith.constant 1.000000e+00 : f32
    %98 = vector.broadcast %cst_29 : f32 to vector<8x128xf32>
    %99 = arith.addf %98, %97 : vector<8x128xf32>
    %100 = arith.divf %98, %99 : vector<8x128xf32>
    %101 = arith.addf %89, %92 : vector<8x128xf32>
    %102 = arith.negf %101 : vector<8x128xf32>
    %103 = math.exp %102 : vector<8x128xf32>
    %cst_30 = arith.constant 1.000000e+00 : f32
    %104 = vector.broadcast %cst_30 : f32 to vector<8x128xf32>
    %105 = arith.addf %104, %103 : vector<8x128xf32>
    %106 = arith.divf %104, %105 : vector<8x128xf32>
    %107 = arith.mulf %100, %94 : vector<8x128xf32>
    %108 = arith.addf %90, %107 : vector<8x128xf32>
    %109 = math.tanh %108 : vector<8x128xf32>
    %cst_31 = arith.constant 1.000000e+00 : f32
    %110 = vector.broadcast %cst_31 : f32 to vector<8x128xf32>
    %111 = arith.subf %110, %106 : vector<8x128xf32>
    %112 = arith.mulf %111, %109 : vector<8x128xf32>
    %113 = arith.mulf %106, %82 : vector<8x128xf32>
    %114 = arith.addf %112, %113 : vector<8x128xf32>
    %c3_i32 = arith.constant 3 : i32
    %c8_i32_32 = arith.constant 8 : i32
    %115 = arith.muli %c3_i32, %c8_i32_32 : i32
    %116 = tpu.assume_multiple %115, 8 : i32
    %117 = arith.index_cast %116 : i32 to index
    %c0_33 = arith.constant 0 : index
    %118 = vector.load %arg11[%117, %c0_33] : memref<64x384xf32, #tpu.memory_space<vmem>>, vector<8x384xf32>
    %cst_34 = arith.constant dense<0.000000e+00> : vector<8x384xf32>
    %119 = tpu.matmul %114, %14, %cst_34 {dimension_numbers = #tpu.dot_dimension_numbers<[1], [0], [0], [1], [0, 0, 1, 1], [], []>} : vector<8x128xf32>, vector<128x384xf32>, vector<8x384xf32> -> vector<8x384xf32>
    %120 = vector.extract_strided_slice %118 {offsets = [0, 0], sizes = [8, 128], strides = [1, 1]} : vector<8x384xf32> to vector<8x128xf32>
    %121 = vector.extract_strided_slice %118 {offsets = [0, 128], sizes = [8, 128], strides = [1, 1]} : vector<8x384xf32> to vector<8x128xf32>
    %122 = vector.extract_strided_slice %118 {offsets = [0, 256], sizes = [8, 128], strides = [1, 1]} : vector<8x384xf32> to vector<8x128xf32>
    %123 = vector.extract_strided_slice %119 {offsets = [0, 0], sizes = [8, 128], strides = [1, 1]} : vector<8x384xf32> to vector<8x128xf32>
    %124 = vector.extract_strided_slice %119 {offsets = [0, 128], sizes = [8, 128], strides = [1, 1]} : vector<8x384xf32> to vector<8x128xf32>
    %125 = vector.extract_strided_slice %119 {offsets = [0, 256], sizes = [8, 128], strides = [1, 1]} : vector<8x384xf32> to vector<8x128xf32>
    %126 = arith.addf %125, %17 : vector<8x128xf32>
    %127 = arith.addf %120, %123 : vector<8x128xf32>
    %128 = arith.negf %127 : vector<8x128xf32>
    %129 = math.exp %128 : vector<8x128xf32>
    %cst_35 = arith.constant 1.000000e+00 : f32
    %130 = vector.broadcast %cst_35 : f32 to vector<8x128xf32>
    %131 = arith.addf %130, %129 : vector<8x128xf32>
    %132 = arith.divf %130, %131 : vector<8x128xf32>
    %133 = arith.addf %121, %124 : vector<8x128xf32>
    %134 = arith.negf %133 : vector<8x128xf32>
    %135 = math.exp %134 : vector<8x128xf32>
    %cst_36 = arith.constant 1.000000e+00 : f32
    %136 = vector.broadcast %cst_36 : f32 to vector<8x128xf32>
    %137 = arith.addf %136, %135 : vector<8x128xf32>
    %138 = arith.divf %136, %137 : vector<8x128xf32>
    %139 = arith.mulf %132, %126 : vector<8x128xf32>
    %140 = arith.addf %122, %139 : vector<8x128xf32>
    %141 = math.tanh %140 : vector<8x128xf32>
    %cst_37 = arith.constant 1.000000e+00 : f32
    %142 = vector.broadcast %cst_37 : f32 to vector<8x128xf32>
    %143 = arith.subf %142, %138 : vector<8x128xf32>
    %144 = arith.mulf %143, %141 : vector<8x128xf32>
    %145 = arith.mulf %138, %114 : vector<8x128xf32>
    %146 = arith.addf %144, %145 : vector<8x128xf32>
    %c4_i32 = arith.constant 4 : i32
    %c8_i32_38 = arith.constant 8 : i32
    %147 = arith.muli %c4_i32, %c8_i32_38 : i32
    %148 = tpu.assume_multiple %147, 8 : i32
    %149 = arith.index_cast %148 : i32 to index
    %c0_39 = arith.constant 0 : index
    %150 = vector.load %arg11[%149, %c0_39] : memref<64x384xf32, #tpu.memory_space<vmem>>, vector<8x384xf32>
    %cst_40 = arith.constant dense<0.000000e+00> : vector<8x384xf32>
    %151 = tpu.matmul %146, %14, %cst_40 {dimension_numbers = #tpu.dot_dimension_numbers<[1], [0], [0], [1], [0, 0, 1, 1], [], []>} : vector<8x128xf32>, vector<128x384xf32>, vector<8x384xf32> -> vector<8x384xf32>
    %152 = vector.extract_strided_slice %150 {offsets = [0, 0], sizes = [8, 128], strides = [1, 1]} : vector<8x384xf32> to vector<8x128xf32>
    %153 = vector.extract_strided_slice %150 {offsets = [0, 128], sizes = [8, 128], strides = [1, 1]} : vector<8x384xf32> to vector<8x128xf32>
    %154 = vector.extract_strided_slice %150 {offsets = [0, 256], sizes = [8, 128], strides = [1, 1]} : vector<8x384xf32> to vector<8x128xf32>
    %155 = vector.extract_strided_slice %151 {offsets = [0, 0], sizes = [8, 128], strides = [1, 1]} : vector<8x384xf32> to vector<8x128xf32>
    %156 = vector.extract_strided_slice %151 {offsets = [0, 128], sizes = [8, 128], strides = [1, 1]} : vector<8x384xf32> to vector<8x128xf32>
    %157 = vector.extract_strided_slice %151 {offsets = [0, 256], sizes = [8, 128], strides = [1, 1]} : vector<8x384xf32> to vector<8x128xf32>
    %158 = arith.addf %157, %17 : vector<8x128xf32>
    %159 = arith.addf %152, %155 : vector<8x128xf32>
    %160 = arith.negf %159 : vector<8x128xf32>
    %161 = math.exp %160 : vector<8x128xf32>
    %cst_41 = arith.constant 1.000000e+00 : f32
    %162 = vector.broadcast %cst_41 : f32 to vector<8x128xf32>
    %163 = arith.addf %162, %161 : vector<8x128xf32>
    %164 = arith.divf %162, %163 : vector<8x128xf32>
    %165 = arith.addf %153, %156 : vector<8x128xf32>
    %166 = arith.negf %165 : vector<8x128xf32>
    %167 = math.exp %166 : vector<8x128xf32>
    %cst_42 = arith.constant 1.000000e+00 : f32
    %168 = vector.broadcast %cst_42 : f32 to vector<8x128xf32>
    %169 = arith.addf %168, %167 : vector<8x128xf32>
    %170 = arith.divf %168, %169 : vector<8x128xf32>
    %171 = arith.mulf %164, %158 : vector<8x128xf32>
    %172 = arith.addf %154, %171 : vector<8x128xf32>
    %173 = math.tanh %172 : vector<8x128xf32>
    %cst_43 = arith.constant 1.000000e+00 : f32
    %174 = vector.broadcast %cst_43 : f32 to vector<8x128xf32>
    %175 = arith.subf %174, %170 : vector<8x128xf32>
    %176 = arith.mulf %175, %173 : vector<8x128xf32>
    %177 = arith.mulf %170, %146 : vector<8x128xf32>
    %178 = arith.addf %176, %177 : vector<8x128xf32>
    %c5_i32 = arith.constant 5 : i32
    %c8_i32_44 = arith.constant 8 : i32
    %179 = arith.muli %c5_i32, %c8_i32_44 : i32
    %180 = tpu.assume_multiple %179, 8 : i32
    %181 = arith.index_cast %180 : i32 to index
    %c0_45 = arith.constant 0 : index
    %182 = vector.load %arg11[%181, %c0_45] : memref<64x384xf32, #tpu.memory_space<vmem>>, vector<8x384xf32>
    %cst_46 = arith.constant dense<0.000000e+00> : vector<8x384xf32>
    %183 = tpu.matmul %178, %14, %cst_46 {dimension_numbers = #tpu.dot_dimension_numbers<[1], [0], [0], [1], [0, 0, 1, 1], [], []>} : vector<8x128xf32>, vector<128x384xf32>, vector<8x384xf32> -> vector<8x384xf32>
    %184 = vector.extract_strided_slice %182 {offsets = [0, 0], sizes = [8, 128], strides = [1, 1]} : vector<8x384xf32> to vector<8x128xf32>
    %185 = vector.extract_strided_slice %182 {offsets = [0, 128], sizes = [8, 128], strides = [1, 1]} : vector<8x384xf32> to vector<8x128xf32>
    %186 = vector.extract_strided_slice %182 {offsets = [0, 256], sizes = [8, 128], strides = [1, 1]} : vector<8x384xf32> to vector<8x128xf32>
    %187 = vector.extract_strided_slice %183 {offsets = [0, 0], sizes = [8, 128], strides = [1, 1]} : vector<8x384xf32> to vector<8x128xf32>
    %188 = vector.extract_strided_slice %183 {offsets = [0, 128], sizes = [8, 128], strides = [1, 1]} : vector<8x384xf32> to vector<8x128xf32>
    %189 = vector.extract_strided_slice %183 {offsets = [0, 256], sizes = [8, 128], strides = [1, 1]} : vector<8x384xf32> to vector<8x128xf32>
    %190 = arith.addf %189, %17 : vector<8x128xf32>
    %191 = arith.addf %184, %187 : vector<8x128xf32>
    %192 = arith.negf %191 : vector<8x128xf32>
    %193 = math.exp %192 : vector<8x128xf32>
    %cst_47 = arith.constant 1.000000e+00 : f32
    %194 = vector.broadcast %cst_47 : f32 to vector<8x128xf32>
    %195 = arith.addf %194, %193 : vector<8x128xf32>
    %196 = arith.divf %194, %195 : vector<8x128xf32>
    %197 = arith.addf %185, %188 : vector<8x128xf32>
    %198 = arith.negf %197 : vector<8x128xf32>
    %199 = math.exp %198 : vector<8x128xf32>
    %cst_48 = arith.constant 1.000000e+00 : f32
    %200 = vector.broadcast %cst_48 : f32 to vector<8x128xf32>
    %201 = arith.addf %200, %199 : vector<8x128xf32>
    %202 = arith.divf %200, %201 : vector<8x128xf32>
    %203 = arith.mulf %196, %190 : vector<8x128xf32>
    %204 = arith.addf %186, %203 : vector<8x128xf32>
    %205 = math.tanh %204 : vector<8x128xf32>
    %cst_49 = arith.constant 1.000000e+00 : f32
    %206 = vector.broadcast %cst_49 : f32 to vector<8x128xf32>
    %207 = arith.subf %206, %202 : vector<8x128xf32>
    %208 = arith.mulf %207, %205 : vector<8x128xf32>
    %209 = arith.mulf %202, %178 : vector<8x128xf32>
    %210 = arith.addf %208, %209 : vector<8x128xf32>
    %c6_i32 = arith.constant 6 : i32
    %c8_i32_50 = arith.constant 8 : i32
    %211 = arith.muli %c6_i32, %c8_i32_50 : i32
    %212 = tpu.assume_multiple %211, 8 : i32
    %213 = arith.index_cast %212 : i32 to index
    %c0_51 = arith.constant 0 : index
    %214 = vector.load %arg11[%213, %c0_51] : memref<64x384xf32, #tpu.memory_space<vmem>>, vector<8x384xf32>
    %cst_52 = arith.constant dense<0.000000e+00> : vector<8x384xf32>
    %215 = tpu.matmul %210, %14, %cst_52 {dimension_numbers = #tpu.dot_dimension_numbers<[1], [0], [0], [1], [0, 0, 1, 1], [], []>} : vector<8x128xf32>, vector<128x384xf32>, vector<8x384xf32> -> vector<8x384xf32>
    %216 = vector.extract_strided_slice %214 {offsets = [0, 0], sizes = [8, 128], strides = [1, 1]} : vector<8x384xf32> to vector<8x128xf32>
    %217 = vector.extract_strided_slice %214 {offsets = [0, 128], sizes = [8, 128], strides = [1, 1]} : vector<8x384xf32> to vector<8x128xf32>
    %218 = vector.extract_strided_slice %214 {offsets = [0, 256], sizes = [8, 128], strides = [1, 1]} : vector<8x384xf32> to vector<8x128xf32>
    %219 = vector.extract_strided_slice %215 {offsets = [0, 0], sizes = [8, 128], strides = [1, 1]} : vector<8x384xf32> to vector<8x128xf32>
    %220 = vector.extract_strided_slice %215 {offsets = [0, 128], sizes = [8, 128], strides = [1, 1]} : vector<8x384xf32> to vector<8x128xf32>
    %221 = vector.extract_strided_slice %215 {offsets = [0, 256], sizes = [8, 128], strides = [1, 1]} : vector<8x384xf32> to vector<8x128xf32>
    %222 = arith.addf %221, %17 : vector<8x128xf32>
    %223 = arith.addf %216, %219 : vector<8x128xf32>
    %224 = arith.negf %223 : vector<8x128xf32>
    %225 = math.exp %224 : vector<8x128xf32>
    %cst_53 = arith.constant 1.000000e+00 : f32
    %226 = vector.broadcast %cst_53 : f32 to vector<8x128xf32>
    %227 = arith.addf %226, %225 : vector<8x128xf32>
    %228 = arith.divf %226, %227 : vector<8x128xf32>
    %229 = arith.addf %217, %220 : vector<8x128xf32>
    %230 = arith.negf %229 : vector<8x128xf32>
    %231 = math.exp %230 : vector<8x128xf32>
    %cst_54 = arith.constant 1.000000e+00 : f32
    %232 = vector.broadcast %cst_54 : f32 to vector<8x128xf32>
    %233 = arith.addf %232, %231 : vector<8x128xf32>
    %234 = arith.divf %232, %233 : vector<8x128xf32>
    %235 = arith.mulf %228, %222 : vector<8x128xf32>
    %236 = arith.addf %218, %235 : vector<8x128xf32>
    %237 = math.tanh %236 : vector<8x128xf32>
    %cst_55 = arith.constant 1.000000e+00 : f32
    %238 = vector.broadcast %cst_55 : f32 to vector<8x128xf32>
    %239 = arith.subf %238, %234 : vector<8x128xf32>
    %240 = arith.mulf %239, %237 : vector<8x128xf32>
    %241 = arith.mulf %234, %210 : vector<8x128xf32>
    %242 = arith.addf %240, %241 : vector<8x128xf32>
    %c7_i32 = arith.constant 7 : i32
    %c8_i32_56 = arith.constant 8 : i32
    %243 = arith.muli %c7_i32, %c8_i32_56 : i32
    %244 = tpu.assume_multiple %243, 8 : i32
    %245 = arith.index_cast %244 : i32 to index
    %c0_57 = arith.constant 0 : index
    %246 = vector.load %arg11[%245, %c0_57] : memref<64x384xf32, #tpu.memory_space<vmem>>, vector<8x384xf32>
    %cst_58 = arith.constant dense<0.000000e+00> : vector<8x384xf32>
    %247 = tpu.matmul %242, %14, %cst_58 {dimension_numbers = #tpu.dot_dimension_numbers<[1], [0], [0], [1], [0, 0, 1, 1], [], []>} : vector<8x128xf32>, vector<128x384xf32>, vector<8x384xf32> -> vector<8x384xf32>
    %248 = vector.extract_strided_slice %246 {offsets = [0, 0], sizes = [8, 128], strides = [1, 1]} : vector<8x384xf32> to vector<8x128xf32>
    %249 = vector.extract_strided_slice %246 {offsets = [0, 128], sizes = [8, 128], strides = [1, 1]} : vector<8x384xf32> to vector<8x128xf32>
    %250 = vector.extract_strided_slice %246 {offsets = [0, 256], sizes = [8, 128], strides = [1, 1]} : vector<8x384xf32> to vector<8x128xf32>
    %251 = vector.extract_strided_slice %247 {offsets = [0, 0], sizes = [8, 128], strides = [1, 1]} : vector<8x384xf32> to vector<8x128xf32>
    %252 = vector.extract_strided_slice %247 {offsets = [0, 128], sizes = [8, 128], strides = [1, 1]} : vector<8x384xf32> to vector<8x128xf32>
    %253 = vector.extract_strided_slice %247 {offsets = [0, 256], sizes = [8, 128], strides = [1, 1]} : vector<8x384xf32> to vector<8x128xf32>
    %254 = arith.addf %253, %17 : vector<8x128xf32>
    %255 = arith.addf %248, %251 : vector<8x128xf32>
    %256 = arith.negf %255 : vector<8x128xf32>
    %257 = math.exp %256 : vector<8x128xf32>
    %cst_59 = arith.constant 1.000000e+00 : f32
    %258 = vector.broadcast %cst_59 : f32 to vector<8x128xf32>
    %259 = arith.addf %258, %257 : vector<8x128xf32>
    %260 = arith.divf %258, %259 : vector<8x128xf32>
    %261 = arith.addf %249, %252 : vector<8x128xf32>
    %262 = arith.negf %261 : vector<8x128xf32>
    %263 = math.exp %262 : vector<8x128xf32>
    %cst_60 = arith.constant 1.000000e+00 : f32
    %264 = vector.broadcast %cst_60 : f32 to vector<8x128xf32>
    %265 = arith.addf %264, %263 : vector<8x128xf32>
    %266 = arith.divf %264, %265 : vector<8x128xf32>
    %267 = arith.mulf %260, %254 : vector<8x128xf32>
    %268 = arith.addf %250, %267 : vector<8x128xf32>
    %269 = math.tanh %268 : vector<8x128xf32>
    %cst_61 = arith.constant 1.000000e+00 : f32
    %270 = vector.broadcast %cst_61 : f32 to vector<8x128xf32>
    %271 = arith.subf %270, %266 : vector<8x128xf32>
    %272 = arith.mulf %271, %269 : vector<8x128xf32>
    %273 = arith.mulf %266, %242 : vector<8x128xf32>
    %274 = arith.addf %272, %273 : vector<8x128xf32>
    %c8_i32_62 = arith.constant 8 : i32
    %c0_63 = arith.constant 0 : index
    %c0_64 = arith.constant 0 : index
    %275 = vector.load %arg10[%c0_63, %c0_64] : memref<8x128xf32, #tpu.memory_space<vmem>>, vector<8x128xf32>
    tpu.vector_store %arg10[%c0_63, %c0_64], %274 {strides = array<i32>} : memref<8x128xf32, #tpu.memory_space<vmem>>, vector<8x128xf32>,
    %c0_i32_65 = arith.constant 0 : i32
    %276 = arith.cmpi eq, %arg1, %c0_i32_65 : i32
    %277 = arith.extui %276 : i1 to i32
    %c0_i32_66 = arith.constant 0 : i32
    %278 = arith.cmpi ne, %277, %c0_i32_66 : i32
    scf.if %278 {
      %c0_67 = arith.constant 0 : index
      %c0_68 = arith.constant 0 : index
      %279 = vector.load %arg7[%c0_67, %c0_68] : memref<128x128xf32, #tpu.memory_space<vmem>>, vector<128x128xf32>
      %cst_69 = arith.constant dense<0.000000e+00> : vector<8x128xf32>
      %280 = tpu.matmul %274, %279, %cst_69 {dimension_numbers = #tpu.dot_dimension_numbers<[1], [0], [0], [1], [0, 0, 1, 1], [], []>} : vector<8x128xf32>, vector<128x128xf32>, vector<8x128xf32> -> vector<8x128xf32>
      %c0_70 = arith.constant 0 : index
      %c0_71 = arith.constant 0 : index
      %281 = vector.load %arg8[%c0_70, %c0_71] : memref<1x128xf32, #tpu.memory_space<vmem>>, vector<1x128xf32>
      %282 = vector.broadcast %281 : vector<1x128xf32> to vector<8x128xf32>
      %283 = arith.addf %280, %282 : vector<8x128xf32>
      %c0_72 = arith.constant 0 : index
      %c0_73 = arith.constant 0 : index
      %284 = vector.load %arg9[%c0_72, %c0_73] : memref<8x128xf32, #tpu.memory_space<vmem>>, vector<8x128xf32>
      tpu.vector_store %arg9[%c0_72, %c0_73], %283 {strides = array<i32>} : memref<8x128xf32, #tpu.memory_space<vmem>>, vector<8x128xf32>,
    } else {
    }
    return
  }
  func.func @transform_0(%arg0: i32, %arg1: i32) -> (i32, i32, i32) {
    %c0_i32 = arith.constant 0 : i32
    %c0_i32_0 = arith.constant 0 : i32
    return %arg1, %arg0, %c0_i32 : i32, i32, i32
  }
  func.func @transform_1(%arg0: i32, %arg1: i32) -> (i32, i32) {
    %c0_i32 = arith.constant 0 : i32
    %c0_i32_0 = arith.constant 0 : i32
    %c0_i32_1 = arith.constant 0 : i32
    return %c0_i32, %c0_i32_0 : i32, i32
  }
  func.func @transform_2(%arg0: i32, %arg1: i32) -> (i32, i32) {
    %c0_i32 = arith.constant 0 : i32
    %c0_i32_0 = arith.constant 0 : i32
    %c0_i32_1 = arith.constant 0 : i32
    return %c0_i32, %c0_i32_0 : i32, i32
  }
  func.func @transform_3(%arg0: i32, %arg1: i32) -> (i32, i32) {
    %c0_i32 = arith.constant 0 : i32
    %c0_i32_0 = arith.constant 0 : i32
    %c0_i32_1 = arith.constant 0 : i32
    return %c0_i32, %c0_i32_0 : i32, i32
  }
  func.func @transform_4(%arg0: i32, %arg1: i32) -> (i32, i32) {
    %c0_i32 = arith.constant 0 : i32
    %c0_i32_0 = arith.constant 0 : i32
    %c0_i32_1 = arith.constant 0 : i32
    return %c0_i32, %c0_i32_0 : i32, i32
  }
  func.func @transform_5(%arg0: i32, %arg1: i32) -> (i32, i32) {
    %c0_i32 = arith.constant 0 : i32
    %c0_i32_0 = arith.constant 0 : i32
    %c0_i32_1 = arith.constant 0 : i32
    return %c0_i32, %c0_i32_0 : i32, i32
  }
  func.func @transform_6(%arg0: i32, %arg1: i32) -> (i32, i32) {
    %c0_i32 = arith.constant 0 : i32
    %c0_i32_0 = arith.constant 0 : i32
    %c0_i32_1 = arith.constant 0 : i32
    return %c0_i32, %c0_i32_0 : i32, i32
  }
  func.func @transform_7(%arg0: i32, %arg1: i32) -> (i32, i32) {
    %c0_i32 = arith.constant 0 : i32
    %c0_i32_0 = arith.constant 0 : i32
    return %arg0, %c0_i32 : i32, i32
  }
}

</mosaic_0001>

<llo_original>
// kernel: my_gru_forward.1
$region0: #{my_gru_forward.1}
  #allocation0 [shape = 'u32[]', space=smem, size = 0x4, offset = 0x4, fixed_abs, tag = 'smem constant byte address 0x4 - core index']
  #allocation1 [shape = 'u32[144,128]{1,0:T(1,128)}', space=vmem, size = 0x12000, scoped, tag = 'internal scratch']
  #allocation2 [shape = 'f32[8,128]{1,0:T(8,128)}', space=vmem, size = 0x1000, scoped, tag = 'scratch operand']
  #allocation3 [shape = 'f32[64,384]{1,0:T(8,128)}', space=vmem, size = 0x18000, scoped, tag = 'scratch operand']
  %s0 = inlined_call_operand.vmem [shape: f32[8,8,1], index: 0, kind: input, shape index: {}]
  %s1 = inlined_call_operand.vmem [shape: f32[1,384], index: 1, kind: input, shape index: {}]
  %s2 = inlined_call_operand.vmem [shape: f32[1,384], index: 2, kind: input, shape index: {}]
  %s3 = inlined_call_operand.vmem [shape: f32[128,384], index: 3, kind: input, shape index: {}]
  %s4 = inlined_call_operand.vmem [shape: f32[1,128], index: 4, kind: input, shape index: {}]
  %s5 = inlined_call_operand.vmem [shape: f32[128,128], index: 5, kind: input, shape index: {}]
  %s6 = inlined_call_operand.vmem [shape: f32[1,128], index: 6, kind: input, shape index: {}]
  %s7 = inlined_call_operand.vmem [shape: f32[8,128], index: 7, kind: output, shape index: {}]
  %s8 = sld [smem:[#allocation0]]
  $region46: #{my_gru_forward.1} parent=0
    _
  %s10 = ssub.s32 1, %s8
  %s11 = scalar_select 0, %s10, %s8
  // Predicated region
  $region2: #{my_gru_forward.1} parent=0 // pred_check
    _
  $region3: #{my_gru_forward.1} parent=0 // pred_check_branch
    %13 = sbr.rel (0) target = $region5
  $region4: #{my_gru_forward.1} parent=0 // pred_region
    _
  $region5: #{my_gru_forward.1} parent=0 // pred_fallthru
    _
  // Predicated region
  $region6: #{my_gru_forward.1} parent=0 // pred_check
    _
  $region7: #{my_gru_forward.1} parent=0 // pred_check_branch
    %15 = sbr.rel (0) target = $region9
  $region8: #{my_gru_forward.1} parent=0 // pred_region
    _
  $region9: #{my_gru_forward.1} parent=0 // pred_fallthru
    _
  // Predicated region
  $region10: #{my_gru_forward.1} parent=0 // pred_check
    _
  $region11: #{my_gru_forward.1} parent=0 // pred_check_branch
    %17 = sbr.rel (0) target = $region13
  $region12: #{my_gru_forward.1} parent=0 // pred_region
    _
  $region13: #{my_gru_forward.1} parent=0 // pred_fallthru
    _
  // Predicated region
  $region14: #{my_gru_forward.1} parent=0 // pred_check
    _
  $region15: #{my_gru_forward.1} parent=0 // pred_check_branch
    %19 = sbr.rel (0) target = $region17
  $region16: #{my_gru_forward.1} parent=0 // pred_region
    _
  $region17: #{my_gru_forward.1} parent=0 // pred_fallthru
    _
  // Predicated region
  $region18: #{my_gru_forward.1} parent=0 // pred_check
    _
  $region19: #{my_gru_forward.1} parent=0 // pred_check_branch
    %21 = sbr.rel (0) target = $region21
  $region20: #{my_gru_forward.1} parent=0 // pred_region
    _
  $region21: #{my_gru_forward.1} parent=0 // pred_fallthru
    _
  // Predicated region
  $region22: #{my_gru_forward.1} parent=0 // pred_check
    _
  $region23: #{my_gru_forward.1} parent=0 // pred_check_branch
    %23 = sbr.rel (0) target = $region25
  $region24: #{my_gru_forward.1} parent=0 // pred_region
    _
  $region25: #{my_gru_forward.1} parent=0 // pred_fallthru
    _
  // Predicated region
  $region26: #{my_gru_forward.1} parent=0 // pred_check
    _
  $region27: #{my_gru_forward.1} parent=0 // pred_check_branch
    %25 = sbr.rel (0) target = $region29
  $region28: #{my_gru_forward.1} parent=0 // pred_region
    _
  $region29: #{my_gru_forward.1} parent=0 // pred_fallthru
    _
  %v26 = vld [vmem:[%s0] sm:$0xff]
  %v27 = vld [vmem:[%s0 + $0x8] sm:$0xff]
  %v28 = vld [vmem:[%s0 + $0x10] sm:$0xff]
  %v29 = vld [vmem:[%s0 + $0x18] sm:$0xff]
  %v30 = vld [vmem:[%s0 + $0x20] sm:$0xff]
  %v31 = vld [vmem:[%s0 + $0x28] sm:$0xff]
  %v32 = vld [vmem:[%s0 + $0x30] sm:$0xff]
  %v33 = vld [vmem:[%s0 + $0x38] sm:$0xff]
  %v34 = vld [vmem:[%s1] sm:$0x7]
  %v35 = vld [vmem:[%s2] sm:$0x7]
  %v37 = vlaneseq
  %v38 = vshrl.u32 %v37, 7
  %v39 = vsub.s32 0, %v38
  %v40 = vrot.slane %v35, %v39
  %v41 = vlaneseq
  %v42 = vshrl.u32 %v41, 7
  %v43 = vsub.s32 1, %v42
  %v44 = vrot.slane %v35, %v43
  %v45 = vlaneseq
  %v46 = vshrl.u32 %v45, 7
  %v47 = vsub.s32 2, %v46
  %v48 = vrot.slane %v35, %v47
  %53 = vset.pattern.permute.xlu0 0
  %54 = vperm.xlu0 %53, %v26
  %v55 = vpop.permute.xlu0 %54
  %58 = vset.pattern.permute.xlu0 0
  %59 = vperm.xlu0 %58, %v27
  %v60 = vpop.permute.xlu0 %59
  %63 = vset.pattern.permute.xlu0 0
  %64 = vperm.xlu0 %63, %v28
  %v65 = vpop.permute.xlu0 %64
  %68 = vset.pattern.permute.xlu0 0
  %69 = vperm.xlu0 %68, %v29
  %v70 = vpop.permute.xlu0 %69
  %73 = vset.pattern.permute.xlu0 0
  %74 = vperm.xlu0 %73, %v30
  %v75 = vpop.permute.xlu0 %74
  %78 = vset.pattern.permute.xlu0 0
  %79 = vperm.xlu0 %78, %v31
  %v80 = vpop.permute.xlu0 %79
  %83 = vset.pattern.permute.xlu0 0
  %84 = vperm.xlu0 %83, %v32
  %v85 = vpop.permute.xlu0 %84
  %88 = vset.pattern.permute.xlu0 0
  %89 = vperm.xlu0 %88, %v33
  %v90 = vpop.permute.xlu0 %89
  %v93 = vlaneseq
  %v94 = vshrl.u32 %v93, 7
  %v95 = vsub.s32 0, %v94
  %v96 = vrot.slane %v34, %v95
  %v97 = vlaneseq
  %v98 = vshrl.u32 %v97, 7
  %v99 = vsub.s32 1, %v98
  %v100 = vrot.slane %v34, %v99
  %v101 = vlaneseq
  %v102 = vshrl.u32 %v101, 7
  %v103 = vsub.s32 2, %v102
  %v104 = vrot.slane %v34, %v103
  %v108 = vmul.f32 %v55, %v96
  %v109 = vmul.f32 %v55, %v100
  %v110 = vmul.f32 %v55, %v104
  %v111 = vmul.f32 %v60, %v96
  %v112 = vmul.f32 %v60, %v100
  %v113 = vmul.f32 %v60, %v104
  %v114 = vmul.f32 %v65, %v96
  %v115 = vmul.f32 %v65, %v100
  %v116 = vmul.f32 %v65, %v104
  %v117 = vmul.f32 %v70, %v96
  %v118 = vmul.f32 %v70, %v100
  %v119 = vmul.f32 %v70, %v104
  %v120 = vmul.f32 %v75, %v96
  %v121 = vmul.f32 %v75, %v100
  %v122 = vmul.f32 %v75, %v104
  %v123 = vmul.f32 %v80, %v96
  %v124 = vmul.f32 %v80, %v100
  %v125 = vmul.f32 %v80, %v104
  %v126 = vmul.f32 %v85, %v96
  %v127 = vmul.f32 %v85, %v100
  %v128 = vmul.f32 %v85, %v104
  %v129 = vmul.f32 %v90, %v96
  %v130 = vmul.f32 %v90, %v100
  %v131 = vmul.f32 %v90, %v104
  %v132 = vadd.f32 %v40, %v108
  %v133 = vadd.f32 %v44, %v109
  %v134 = vadd.f32 %v48, %v110
  %v135 = vadd.f32 %v40, %v111
  %v136 = vadd.f32 %v44, %v112
  %v137 = vadd.f32 %v48, %v113
  %v138 = vadd.f32 %v40, %v114
  %v139 = vadd.f32 %v44, %v115
  %v140 = vadd.f32 %v48, %v116
  %v141 = vadd.f32 %v40, %v117
  %v142 = vadd.f32 %v44, %v118
  %v143 = vadd.f32 %v48, %v119
  %v144 = vadd.f32 %v40, %v120
  %v145 = vadd.f32 %v44, %v121
  %v146 = vadd.f32 %v48, %v122
  %v147 = vadd.f32 %v40, %v123
  %v148 = vadd.f32 %v44, %v124
  %v149 = vadd.f32 %v48, %v125
  %v150 = vadd.f32 %v40, %v126
  %v151 = vadd.f32 %v44, %v127
  %v152 = vadd.f32 %v48, %v128
  %v153 = vadd.f32 %v40, %v129
  %v154 = vadd.f32 %v44, %v130
  %v155 = vadd.f32 %v48, %v131
  %156 = vst [vmem:[#allocation3] sm:$0xff] %v132
  %157 = vst [vmem:[#allocation3 + $0x8] sm:$0xff] %v133
  %158 = vst [vmem:[#allocation3 + $0x10] sm:$0xff] %v134
  %159 = vst [vmem:[#allocation3 + $0x18] sm:$0xff] %v135
  %160 = vst [vmem:[#allocation3 + $0x20] sm:$0xff] %v136
  %161 = vst [vmem:[#allocation3 + $0x28] sm:$0xff] %v137
  %162 = vst [vmem:[#allocation3 + $0x30] sm:$0xff] %v138
  %163 = vst [vmem:[#allocation3 + $0x38] sm:$0xff] %v139
  %164 = vst [vmem:[#allocation3 + $0x40] sm:$0xff] %v140
  %165 = vst [vmem:[#allocation3 + $0x48] sm:$0xff] %v141
  %166 = vst [vmem:[#allocation3 + $0x50] sm:$0xff] %v142
  %167 = vst [vmem:[#allocation3 + $0x58] sm:$0xff] %v143
  %168 = vst [vmem:[#allocation3 + $0x60] sm:$0xff] %v144
  %169 = vst [vmem:[#allocation3 + $0x68] sm:$0xff] %v145
  %170 = vst [vmem:[#allocation3 + $0x70] sm:$0xff] %v146
  %171 = vst [vmem:[#allocation3 + $0x78] sm:$0xff] %v147
  %172 = vst [vmem:[#allocation3 + $0x80] sm:$0xff] %v148
  %173 = vst [vmem:[#allocation3 + $0x88] sm:$0xff] %v149
  %174 = vst [vmem:[#allocation3 + $0x90] sm:$0xff] %v150
  %175 = vst [vmem:[#allocation3 + $0x98] sm:$0xff] %v151
  %176 = vst [vmem:[#allocation3 + $0xa0] sm:$0xff] %v152
  %177 = vst [vmem:[#allocation3 + $0xa8] sm:$0xff] %v153
  %178 = vst [vmem:[#allocation3 + $0xb0] sm:$0xff] %v154
  %179 = vst [vmem:[#allocation3 + $0xb8] sm:$0xff] %v155
  %p180 = scmp.eq.s32.totalorder 0, 0
  // Predicated region
  $region30: #{my_gru_forward.1} parent=0 // pred_check
    %p181 = pneg %p180
  $region31: #{my_gru_forward.1} parent=0 // pred_check_branch
    %183 = sbr.rel (%p181) target = $region33
  $region32: #{my_gru_forward.1} parent=0 // pred_region
    %184 = vst [vmem:[#allocation2] sm:$0xff] 0.0
  $region33: #{my_gru_forward.1} parent=0 // pred_fallthru
    _
  %v185 = vld [vmem:[%s3] sm:$0xff]
  %v186 = vld [vmem:[%s3 + $0x8] sm:$0xff]
  %v187 = vld [vmem:[%s3 + $0x10] sm:$0xff]
  %v188 = vld [vmem:[%s3 + $0x18] sm:$0xff]
  %v189 = vld [vmem:[%s3 + $0x20] sm:$0xff]
  %v190 = vld [vmem:[%s3 + $0x28] sm:$0xff]
  %v191 = vld [vmem:[%s3 + $0x30] sm:$0xff]
  %v192 = vld [vmem:[%s3 + $0x38] sm:$0xff]
  %v193 = vld [vmem:[%s3 + $0x40] sm:$0xff]
  %v194 = vld [vmem:[%s3 + $0x48] sm:$0xff]
  %v195 = vld [vmem:[%s3 + $0x50] sm:$0xff]
  %v196 = vld [vmem:[%s3 + $0x58] sm:$0xff]
  %v197 = vld [vmem:[%s3 + $0x60] sm:$0xff]
  %v198 = vld [vmem:[%s3 + $0x68] sm:$0xff]
  %v199 = vld [vmem:[%s3 + $0x70] sm:$0xff]
  %v200 = vld [vmem:[%s3 + $0x78] sm:$0xff]
  %v201 = vld [vmem:[%s3 + $0x80] sm:$0xff]
  %v202 = vld [vmem:[%s3 + $0x88] sm:$0xff]
  %v203 = vld [vmem:[%s3 + $0x90] sm:$0xff]
  %v204 = vld [vmem:[%s3 + $0x98] sm:$0xff]
  %v205 = vld [vmem:[%s3 + $0xa0] sm:$0xff]
  %v206 = vld [vmem:[%s3 + $0xa8] sm:$0xff]
  %v207 = vld [vmem:[%s3 + $0xb0] sm:$0xff]
  %v208 = vld [vmem:[%s3 + $0xb8] sm:$0xff]
  %v209 = vld [vmem:[%s3 + $0xc0] sm:$0xff]
  %v210 = vld [vmem:[%s3 + $0xc8] sm:$0xff]
  %v211 = vld [vmem:[%s3 + $0xd0] sm:$0xff]
  %v212 = vld [vmem:[%s3 + $0xd8] sm:$0xff]
  %v213 = vld [vmem:[%s3 + $0xe0] sm:$0xff]
  %v214 = vld [vmem:[%s3 + $0xe8] sm:$0xff]
  %v215 = vld [vmem:[%s3 + $0xf0] sm:$0xff]
  %v216 = vld [vmem:[%s3 + $0xf8] sm:$0xff]
  %v217 = vld [vmem:[%s3 + $0x100] sm:$0xff]
  %v218 = vld [vmem:[%s3 + $0x108] sm:$0xff]
  %v219 = vld [vmem:[%s3 + $0x110] sm:$0xff]
  %v220 = vld [vmem:[%s3 + $0x118] sm:$0xff]
  %v221 = vld [vmem:[%s3 + $0x120] sm:$0xff]
  %v222 = vld [vmem:[%s3 + $0x128] sm:$0xff]
  %v223 = vld [vmem:[%s3 + $0x130] sm:$0xff]
  %v224 = vld [vmem:[%s3 + $0x138] sm:$0xff]
  %v225 = vld [vmem:[%s3 + $0x140] sm:$0xff]
  %v226 = vld [vmem:[%s3 + $0x148] sm:$0xff]
  %v227 = vld [vmem:[%s3 + $0x150] sm:$0xff]
  %v228 = vld [vmem:[%s3 + $0x158] sm:$0xff]
  %v229 = vld [vmem:[%s3 + $0x160] sm:$0xff]
  %v230 = vld [vmem:[%s3 + $0x168] sm:$0xff]
  %v231 = vld [vmem:[%s3 + $0x170] sm:$0xff]
  %v232 = vld [vmem:[%s3 + $0x178] sm:$0xff]
  %v233 = vld [vmem:[%s4] sm:$0x1]
  %v235 = vlaneseq
  %v236 = vshrl.u32 %v235, 7
  %v237 = vsub.s32 0, %v236
  %v238 = vrot.slane %v233, %v237
  %v240 = vld [vmem:[#allocation2] sm:$0xff]
  %s241 = smul.u32 0, 3
  %s242 = smul.addr %s241, 8
  %s243 = scalar_lea.vmem [#allocation3], %s242
  %v244 = vld [vmem:[%s243] sm:$0xff]
  %v245 = vld [vmem:[%s243 + $0x8] sm:$0xff]
  %v246 = vld [vmem:[%s243 + $0x10] sm:$0xff]
  %247 = vmatprep.subr.mxu0 %v186
  %248 = vmatpush1.msra.mxu0 %v185
  %249 = vmatprep.subr.mxu0 %v189
  %250 = vmatpush1.msra.mxu0 %v188
  %251 = vmatprep.subr.mxu0 %v192
  %252 = vmatpush1.msra.mxu0 %v191
  %253 = vmatprep.subr.mxu0 %v195
  %254 = vmatpush1.msra.mxu0 %v194
  %255 = vmatprep.subr.mxu0 %v198
  %256 = vmatpush1.msra.mxu0 %v197
  %257 = vmatprep.subr.mxu0 %v201
  %258 = vmatpush1.msra.mxu0 %v200
  %259 = vmatprep.subr.mxu0 %v204
  %260 = vmatpush1.msra.mxu0 %v203
  %261 = vmatprep.subr.mxu0 %v207
  %262 = vmatpush1.msra.mxu0 %v206
  %263 = vmatprep.subr.mxu0 %v210
  %264 = vmatpush1.msra.mxu0 %v209
  %265 = vmatprep.subr.mxu0 %v213
  %266 = vmatpush1.msra.mxu0 %v212
  %267 = vmatprep.subr.mxu0 %v216
  %268 = vmatpush1.msra.mxu0 %v215
  %269 = vmatprep.subr.mxu0 %v219
  %270 = vmatpush1.msra.mxu0 %v218
  %271 = vmatprep.subr.mxu0 %v222
  %272 = vmatpush1.msra.mxu0 %v221
  %273 = vmatprep.subr.mxu0 %v225
  %274 = vmatpush1.msra.mxu0 %v224
  %275 = vmatprep.subr.mxu0 %v228
  %276 = vmatpush1.msra.mxu0 %v227
  %277 = vmatprep.subr.mxu0 %v231
  %278 = vmatpush1.msra.mxu0 %v230
  %279 = vmatprep.subr.mxu0 0.0
  %280 = vmatpush1.msra.mxu0 0.0
  %281 = vmatprep.subr.mxu0 0.0
  %282 = vmatpush1.msra.mxu0 0.0
  %283 = vmatprep.subr.mxu0 0.0
  %284 = vmatpush1.msra.mxu0 0.0
  %285 = vmatprep.subr.mxu0 0.0
  %286 = vmatpush1.msra.mxu0 0.0
  %287 = vmatprep.subr.mxu0 0.0
  %288 = vmatpush1.msra.mxu0 0.0
  %289 = vmatprep.subr.mxu0 0.0
  %290 = vmatpush1.msra.mxu0 0.0
  %291 = vmatprep.subr.mxu0 0.0
  %292 = vmatpush1.msra.mxu0 0.0
  %293 = vmatprep.subr.mxu0 0.0
  %294 = vmatpush1.msra.mxu0 0.0
  %295 = vmatprep.subr.mxu0 0.0
  %296 = vmatpush1.msra.mxu0 0.0
  %297 = vmatprep.subr.mxu0 0.0
  %298 = vmatpush1.msra.mxu0 0.0
  %299 = vmatprep.subr.mxu0 0.0
  %300 = vmatpush1.msra.mxu0 0.0
  %301 = vmatprep.subr.mxu0 0.0
  %302 = vmatpush1.msra.mxu0 0.0
  %303 = vmatprep.subr.mxu0 0.0
  %304 = vmatpush1.msra.mxu0 0.0
  %305 = vmatprep.subr.mxu0 0.0
  %306 = vmatpush1.msra.mxu0 0.0
  %307 = vmatprep.subr.mxu0 0.0
  %308 = vmatpush1.msra.mxu0 0.0
  %309 = vmatprep.subr.mxu0 0.0
  %310 = vmatpush1.msra.mxu0 0.0
  %311 = vmatprep.mubr.f32.mxu0 0.0
  %312 = vmatmul.mubr.f32.gmra.mrb[0].mxu0 %v240
  %v313 = vpop.f32.mrb[0].mxu0
  %v314 = vadd.f32 0.0, %v313
  %v315 = vpop.f32.mrb[0].mxu0
  %v316 = vadd.f32 0.0, %v315
  %317 = vdwg.mxu0
  %318 = vmatprep.subr.mxu0 0.0
  %319 = vmatpush1.msra.mxu0 %v187
  %320 = vmatprep.subr.mxu0 0.0
  %321 = vmatpush1.msra.mxu0 %v190
  %322 = vmatprep.subr.mxu0 0.0
  %323 = vmatpush1.msra.mxu0 %v193
  %324 = vmatprep.subr.mxu0 0.0
  %325 = vmatpush1.msra.mxu0 %v196
  %326 = vmatprep.subr.mxu0 0.0
  %327 = vmatpush1.msra.mxu0 %v199
  %328 = vmatprep.subr.mxu0 0.0
  %329 = vmatpush1.msra.mxu0 %v202
  %330 = vmatprep.subr.mxu0 0.0
  %331 = vmatpush1.msra.mxu0 %v205
  %332 = vmatprep.subr.mxu0 0.0
  %333 = vmatpush1.msra.mxu0 %v208
  %334 = vmatprep.subr.mxu0 0.0
  %335 = vmatpush1.msra.mxu0 %v211
  %336 = vmatprep.subr.mxu0 0.0
  %337 = vmatpush1.msra.mxu0 %v214
  %338 = vmatprep.subr.mxu0 0.0
  %339 = vmatpush1.msra.mxu0 %v217
  %340 = vmatprep.subr.mxu0 0.0
  %341 = vmatpush1.msra.mxu0 %v220
  %342 = vmatprep.subr.mxu0 0.0
  %343 = vmatpush1.msra.mxu0 %v223
  %344 = vmatprep.subr.mxu0 0.0
  %345 = vmatpush1.msra.mxu0 %v226
  %346 = vmatprep.subr.mxu0 0.0
  %347 = vmatpush1.msra.mxu0 %v229
  %348 = vmatprep.subr.mxu0 0.0
  %349 = vmatpush1.msra.mxu0 %v232
  %350 = vmatprep.subr.mxu0 0.0
  %351 = vmatpush1.msra.mxu0 0.0
  %352 = vmatprep.subr.mxu0 0.0
  %353 = vmatpush1.msra.mxu0 0.0
  %354 = vmatprep.subr.mxu0 0.0
  %355 = vmatpush1.msra.mxu0 0.0
  %356 = vmatprep.subr.mxu0 0.0
  %357 = vmatpush1.msra.mxu0 0.0
  %358 = vmatprep.subr.mxu0 0.0
  %359 = vmatpush1.msra.mxu0 0.0
  %360 = vmatprep.subr.mxu0 0.0
  %361 = vmatpush1.msra.mxu0 0.0
  %362 = vmatprep.subr.mxu0 0.0
  %363 = vmatpush1.msra.mxu0 0.0
  %364 = vmatprep.subr.mxu0 0.0
  %365 = vmatpush1.msra.mxu0 0.0
  %366 = vmatprep.subr.mxu0 0.0
  %367 = vmatpush1.msra.mxu0 0.0
  %368 = vmatprep.subr.mxu0 0.0
  %369 = vmatpush1.msra.mxu0 0.0
  %370 = vmatprep.subr.mxu0 0.0
  %371 = vmatpush1.msra.mxu0 0.0
  %372 = vmatprep.subr.mxu0 0.0
  %373 = vmatpush1.msra.mxu0 0.0
  %374 = vmatprep.subr.mxu0 0.0
  %375 = vmatpush1.msra.mxu0 0.0
  %376 = vmatprep.subr.mxu0 0.0
  %377 = vmatpush1.msra.mxu0 0.0
  %378 = vmatprep.subr.mxu0 0.0
  %379 = vmatpush1.msra.mxu0 0.0
  %380 = vmatprep.subr.mxu0 0.0
  %381 = vmatpush1.msra.mxu0 0.0
  %382 = vmatprep.mubr.f32.mxu0 0.0
  %383 = vmatmul.mubr.f32.gmra.mrb[0].mxu0 %v240
  %v384 = vpop.f32.mrb[0].mxu0
  %v385 = vadd.f32 0.0, %v384
  %v386 = vpop.f32.mrb[0].mxu0
  %387 = vdwg.mxu0
  %v388 = vadd.f32 %v385, %v238
  %v389 = vadd.f32 %v244, %v314
  %v390 = vxor.u32 %v389, 2147483648
  %v391 = vmul.f32 %v390, 1.442695
  %v392 = vpow.pop %v391
  %v393 = vadd.f32 %v392, 1.0
  %v394 = vrcp.pop %v393
  %v395 = vmul.f32 1.0, %v394
  %v396 = vadd.f32 %v245, %v316
  %v397 = vxor.u32 %v396, 2147483648
  %v398 = vmul.f32 %v397, 1.442695
  %v399 = vpow.pop %v398
  %v400 = vadd.f32 %v399, 1.0
  %v401 = vrcp.pop %v400
  %v402 = vmul.f32 1.0, %v401
  %v403 = vmul.f32 %v395, %v388
  %v404 = vadd.f32 %v246, %v403
  %v405 = vtanh.pop %v404
  %v406 = vsub.f32 1.0, %v402
  %v407 = vmul.f32 %v406, %v405
  %v408 = vmul.f32 %v402, %v240
  %v409 = vadd.f32 %v407, %v408
  %s410 = smul.u32 1, 3
  %s411 = smul.addr %s410, 8
  %s412 = scalar_lea.vmem [#allocation3], %s411
  %v413 = vld [vmem:[%s412] sm:$0xff]
  %v414 = vld [vmem:[%s412 + $0x8] sm:$0xff]
  %v415 = vld [vmem:[%s412 + $0x10] sm:$0xff]
  %416 = vmatprep.subr.mxu0 %v186
  %417 = vmatpush1.msra.mxu0 %v185
  %418 = vmatprep.subr.mxu0 %v189
  %419 = vmatpush1.msra.mxu0 %v188
  %420 = vmatprep.subr.mxu0 %v192
  %421 = vmatpush1.msra.mxu0 %v191
  %422 = vmatprep.subr.mxu0 %v195
  %423 = vmatpush1.msra.mxu0 %v194
  %424 = vmatprep.subr.mxu0 %v198
  %425 = vmatpush1.msra.mxu0 %v197
  %426 = vmatprep.subr.mxu0 %v201
  %427 = vmatpush1.msra.mxu0 %v200
  %428 = vmatprep.subr.mxu0 %v204
  %429 = vmatpush1.msra.mxu0 %v203
  %430 = vmatprep.subr.mxu0 %v207
  %431 = vmatpush1.msra.mxu0 %v206
  %432 = vmatprep.subr.mxu0 %v210
  %433 = vmatpush1.msra.mxu0 %v209
  %434 = vmatprep.subr.mxu0 %v213
  %435 = vmatpush1.msra.mxu0 %v212
  %436 = vmatprep.subr.mxu0 %v216
  %437 = vmatpush1.msra.mxu0 %v215
  %438 = vmatprep.subr.mxu0 %v219
  %439 = vmatpush1.msra.mxu0 %v218
  %440 = vmatprep.subr.mxu0 %v222
  %441 = vmatpush1.msra.mxu0 %v221
  %442 = vmatprep.subr.mxu0 %v225
  %443 = vmatpush1.msra.mxu0 %v224
  %444 = vmatprep.subr.mxu0 %v228
  %445 = vmatpush1.msra.mxu0 %v227
  %446 = vmatprep.subr.mxu0 %v231
  %447 = vmatpush1.msra.mxu0 %v230
  %448 = vmatprep.subr.mxu0 0.0
  %449 = vmatpush1.msra.mxu0 0.0
  %450 = vmatprep.subr.mxu0 0.0
  %451 = vmatpush1.msra.mxu0 0.0
  %452 = vmatprep.subr.mxu0 0.0
  %453 = vmatpush1.msra.mxu0 0.0
  %454 = vmatprep.subr.mxu0 0.0
  %455 = vmatpush1.msra.mxu0 0.0
  %456 = vmatprep.subr.mxu0 0.0
  %457 = vmatpush1.msra.mxu0 0.0
  %458 = vmatprep.subr.mxu0 0.0
  %459 = vmatpush1.msra.mxu0 0.0
  %460 = vmatprep.subr.mxu0 0.0
  %461 = vmatpush1.msra.mxu0 0.0
  %462 = vmatprep.subr.mxu0 0.0
  %463 = vmatpush1.msra.mxu0 0.0
  %464 = vmatprep.subr.mxu0 0.0
  %465 = vmatpush1.msra.mxu0 0.0
  %466 = vmatprep.subr.mxu0 0.0
  %467 = vmatpush1.msra.mxu0 0.0
  %468 = vmatprep.subr.mxu0 0.0
  %469 = vmatpush1.msra.mxu0 0.0
  %470 = vmatprep.subr.mxu0 0.0
  %471 = vmatpush1.msra.mxu0 0.0
  %472 = vmatprep.subr.mxu0 0.0
  %473 = vmatpush1.msra.mxu0 0.0
  %474 = vmatprep.subr.mxu0 0.0
  %475 = vmatpush1.msra.mxu0 0.0
  %476 = vmatprep.subr.mxu0 0.0
  %477 = vmatpush1.msra.mxu0 0.0
  %478 = vmatprep.subr.mxu0 0.0
  %479 = vmatpush1.msra.mxu0 0.0
  %480 = vmatprep.mubr.f32.mxu0 0.0
  %481 = vmatmul.mubr.f32.gmra.mrb[0].mxu0 %v409
  %v482 = vpop.f32.mrb[0].mxu0
  %v483 = vadd.f32 0.0, %v482
  %v484 = vpop.f32.mrb[0].mxu0
  %v485 = vadd.f32 0.0, %v484
  %486 = vdwg.mxu0
  %487 = vmatprep.subr.mxu0 0.0
  %488 = vmatpush1.msra.mxu0 %v187
  %489 = vmatprep.subr.mxu0 0.0
  %490 = vmatpush1.msra.mxu0 %v190
  %491 = vmatprep.subr.mxu0 0.0
  %492 = vmatpush1.msra.mxu0 %v193
  %493 = vmatprep.subr.mxu0 0.0
  %494 = vmatpush1.msra.mxu0 %v196
  %495 = vmatprep.subr.mxu0 0.0
  %496 = vmatpush1.msra.mxu0 %v199
  %497 = vmatprep.subr.mxu0 0.0
  %498 = vmatpush1.msra.mxu0 %v202
  %499 = vmatprep.subr.mxu0 0.0
  %500 = vmatpush1.msra.mxu0 %v205
  %501 = vmatprep.subr.mxu0 0.0
  %502 = vmatpush1.msra.mxu0 %v208
  %503 = vmatprep.subr.mxu0 0.0
  %504 = vmatpush1.msra.mxu0 %v211
  %505 = vmatprep.subr.mxu0 0.0
  %506 = vmatpush1.msra.mxu0 %v214
  %507 = vmatprep.subr.mxu0 0.0
  %508 = vmatpush1.msra.mxu0 %v217
  %509 = vmatprep.subr.mxu0 0.0
  %510 = vmatpush1.msra.mxu0 %v220
  %511 = vmatprep.subr.mxu0 0.0
  %512 = vmatpush1.msra.mxu0 %v223
  %513 = vmatprep.subr.mxu0 0.0
  %514 = vmatpush1.msra.mxu0 %v226
  %515 = vmatprep.subr.mxu0 0.0
  %516 = vmatpush1.msra.mxu0 %v229
  %517 = vmatprep.subr.mxu0 0.0
  %518 = vmatpush1.msra.mxu0 %v232
  %519 = vmatprep.subr.mxu0 0.0
  %520 = vmatpush1.msra.mxu0 0.0
  %521 = vmatprep.subr.mxu0 0.0
  %522 = vmatpush1.msra.mxu0 0.0
  %523 = vmatprep.subr.mxu0 0.0
  %524 = vmatpush1.msra.mxu0 0.0
  %525 = vmatprep.subr.mxu0 0.0
  %526 = vmatpush1.msra.mxu0 0.0
  %527 = vmatprep.subr.mxu0 0.0
  %528 = vmatpush1.msra.mxu0 0.0
  %529 = vmatprep.subr.mxu0 0.0
  %530 = vmatpush1.msra.mxu0 0.0
  %531 = vmatprep.subr.mxu0 0.0
  %532 = vmatpush1.msra.mxu0 0.0
  %533 = vmatprep.subr.mxu0 0.0
  %534 = vmatpush1.msra.mxu0 0.0
  %535 = vmatprep.subr.mxu0 0.0
  %536 = vmatpush1.msra.mxu0 0.0
  %537 = vmatprep.subr.mxu0 0.0
  %538 = vmatpush1.msra.mxu0 0.0
  %539 = vmatprep.subr.mxu0 0.0
  %540 = vmatpush1.msra.mxu0 0.0
  %541 = vmatprep.subr.mxu0 0.0
  %542 = vmatpush1.msra.mxu0 0.0
  %543 = vmatprep.subr.mxu0 0.0
  %544 = vmatpush1.msra.mxu0 0.0
  %545 = vmatprep.subr.mxu0 0.0
  %546 = vmatpush1.msra.mxu0 0.0
  %547 = vmatprep.subr.mxu0 0.0
  %548 = vmatpush1.msra.mxu0 0.0
  %549 = vmatprep.subr.mxu0 0.0
  %550 = vmatpush1.msra.mxu0 0.0
  %551 = vmatprep.mubr.f32.mxu0 0.0
  %552 = vmatmul.mubr.f32.gmra.mrb[0].mxu0 %v409
  %v553 = vpop.f32.mrb[0].mxu0
  %v554 = vadd.f32 0.0, %v553
  %v555 = vpop.f32.mrb[0].mxu0
  %556 = vdwg.mxu0
  %v557 = vadd.f32 %v554, %v238
  %v558 = vadd.f32 %v413, %v483
  %v559 = vxor.u32 %v558, 2147483648
  %v560 = vmul.f32 %v559, 1.442695
  %v561 = vpow.pop %v560
  %v562 = vadd.f32 %v561, 1.0
  %v563 = vrcp.pop %v562
  %v564 = vmul.f32 1.0, %v563
  %v565 = vadd.f32 %v414, %v485
  %v566 = vxor.u32 %v565, 2147483648
  %v567 = vmul.f32 %v566, 1.442695
  %v568 = vpow.pop %v567
  %v569 = vadd.f32 %v568, 1.0
  %v570 = vrcp.pop %v569
  %v571 = vmul.f32 1.0, %v570
  %v572 = vmul.f32 %v564, %v557
  %v573 = vadd.f32 %v415, %v572
  %v574 = vtanh.pop %v573
  %v575 = vsub.f32 1.0, %v571
  %v576 = vmul.f32 %v575, %v574
  %v577 = vmul.f32 %v571, %v409
  %v578 = vadd.f32 %v576, %v577
  %s579 = smul.u32 2, 3
  %s580 = smul.addr %s579, 8
  %s581 = scalar_lea.vmem [#allocation3], %s580
  %v582 = vld [vmem:[%s581] sm:$0xff]
  %v583 = vld [vmem:[%s581 + $0x8] sm:$0xff]
  %v584 = vld [vmem:[%s581 + $0x10] sm:$0xff]
  %585 = vmatprep.subr.mxu0 %v186
  %586 = vmatpush1.msra.mxu0 %v185
  %587 = vmatprep.subr.mxu0 %v189
  %588 = vmatpush1.msra.mxu0 %v188
  %589 = vmatprep.subr.mxu0 %v192
  %590 = vmatpush1.msra.mxu0 %v191
  %591 = vmatprep.subr.mxu0 %v195
  %592 = vmatpush1.msra.mxu0 %v194
  %593 = vmatprep.subr.mxu0 %v198
  %594 = vmatpush1.msra.mxu0 %v197
  %595 = vmatprep.subr.mxu0 %v201
  %596 = vmatpush1.msra.mxu0 %v200
  %597 = vmatprep.subr.mxu0 %v204
  %598 = vmatpush1.msra.mxu0 %v203
  %599 = vmatprep.subr.mxu0 %v207
  %600 = vmatpush1.msra.mxu0 %v206
  %601 = vmatprep.subr.mxu0 %v210
  %602 = vmatpush1.msra.mxu0 %v209
  %603 = vmatprep.subr.mxu0 %v213
  %604 = vmatpush1.msra.mxu0 %v212
  %605 = vmatprep.subr.mxu0 %v216
  %606 = vmatpush1.msra.mxu0 %v215
  %607 = vmatprep.subr.mxu0 %v219
  %608 = vmatpush1.msra.mxu0 %v218
  %609 = vmatprep.subr.mxu0 %v222
  %610 = vmatpush1.msra.mxu0 %v221
  %611 = vmatprep.subr.mxu0 %v225
  %612 = vmatpush1.msra.mxu0 %v224
  %613 = vmatprep.subr.mxu0 %v228
  %614 = vmatpush1.msra.mxu0 %v227
  %615 = vmatprep.subr.mxu0 %v231
  %616 = vmatpush1.msra.mxu0 %v230
  %617 = vmatprep.subr.mxu0 0.0
  %618 = vmatpush1.msra.mxu0 0.0
  %619 = vmatprep.subr.mxu0 0.0
  %620 = vmatpush1.msra.mxu0 0.0
  %621 = vmatprep.subr.mxu0 0.0
  %622 = vmatpush1.msra.mxu0 0.0
  %623 = vmatprep.subr.mxu0 0.0
  %624 = vmatpush1.msra.mxu0 0.0
  %625 = vmatprep.subr.mxu0 0.0
  %626 = vmatpush1.msra.mxu0 0.0
  %627 = vmatprep.subr.mxu0 0.0
  %628 = vmatpush1.msra.mxu0 0.0
  %629 = vmatprep.subr.mxu0 0.0
  %630 = vmatpush1.msra.mxu0 0.0
  %631 = vmatprep.subr.mxu0 0.0
  %632 = vmatpush1.msra.mxu0 0.0
  %633 = vmatprep.subr.mxu0 0.0
  %634 = vmatpush1.msra.mxu0 0.0
  %635 = vmatprep.subr.mxu0 0.0
  %636 = vmatpush1.msra.mxu0 0.0
  %637 = vmatprep.subr.mxu0 0.0
  %638 = vmatpush1.msra.mxu0 0.0
  %639 = vmatprep.subr.mxu0 0.0
  %640 = vmatpush1.msra.mxu0 0.0
  %641 = vmatprep.subr.mxu0 0.0
  %642 = vmatpush1.msra.mxu0 0.0
  %643 = vmatprep.subr.mxu0 0.0
  %644 = vmatpush1.msra.mxu0 0.0
  %645 = vmatprep.subr.mxu0 0.0
  %646 = vmatpush1.msra.mxu0 0.0
  %647 = vmatprep.subr.mxu0 0.0
  %648 = vmatpush1.msra.mxu0 0.0
  %649 = vmatprep.mubr.f32.mxu0 0.0
  %650 = vmatmul.mubr.f32.gmra.mrb[0].mxu0 %v578
  %v651 = vpop.f32.mrb[0].mxu0
  %v652 = vadd.f32 0.0, %v651
  %v653 = vpop.f32.mrb[0].mxu0
  %v654 = vadd.f32 0.0, %v653
  %655 = vdwg.mxu0
  %656 = vmatprep.subr.mxu0 0.0
  %657 = vmatpush1.msra.mxu0 %v187
  %658 = vmatprep.subr.mxu0 0.0
  %659 = vmatpush1.msra.mxu0 %v190
  %660 = vmatprep.subr.mxu0 0.0
  %661 = vmatpush1.msra.mxu0 %v193
  %662 = vmatprep.subr.mxu0 0.0
  %663 = vmatpush1.msra.mxu0 %v196
  %664 = vmatprep.subr.mxu0 0.0
  %665 = vmatpush1.msra.mxu0 %v199
  %666 = vmatprep.subr.mxu0 0.0
  %667 = vmatpush1.msra.mxu0 %v202
  %668 = vmatprep.subr.mxu0 0.0
  %669 = vmatpush1.msra.mxu0 %v205
  %670 = vmatprep.subr.mxu0 0.0
  %671 = vmatpush1.msra.mxu0 %v208
  %672 = vmatprep.subr.mxu0 0.0
  %673 = vmatpush1.msra.mxu0 %v211
  %674 = vmatprep.subr.mxu0 0.0
  %675 = vmatpush1.msra.mxu0 %v214
  %676 = vmatprep.subr.mxu0 0.0
  %677 = vmatpush1.msra.mxu0 %v217
  %678 = vmatprep.subr.mxu0 0.0
  %679 = vmatpush1.msra.mxu0 %v220
  %680 = vmatprep.subr.mxu0 0.0
  %681 = vmatpush1.msra.mxu0 %v223
  %682 = vmatprep.subr.mxu0 0.0
  %683 = vmatpush1.msra.mxu0 %v226
  %684 = vmatprep.subr.mxu0 0.0
  %685 = vmatpush1.msra.mxu0 %v229
  %686 = vmatprep.subr.mxu0 0.0
  %687 = vmatpush1.msra.mxu0 %v232
  %688 = vmatprep.subr.mxu0 0.0
  %689 = vmatpush1.msra.mxu0 0.0
  %690 = vmatprep.subr.mxu0 0.0
  %691 = vmatpush1.msra.mxu0 0.0
  %692 = vmatprep.subr.mxu0 0.0
  %693 = vmatpush1.msra.mxu0 0.0
  %694 = vmatprep.subr.mxu0 0.0
  %695 = vmatpush1.msra.mxu0 0.0
  %696 = vmatprep.subr.mxu0 0.0
  %697 = vmatpush1.msra.mxu0 0.0
  %698 = vmatprep.subr.mxu0 0.0
  %699 = vmatpush1.msra.mxu0 0.0
  %700 = vmatprep.subr.mxu0 0.0
  %701 = vmatpush1.msra.mxu0 0.0
  %702 = vmatprep.subr.mxu0 0.0
  %703 = vmatpush1.msra.mxu0 0.0
  %704 = vmatprep.subr.mxu0 0.0
  %705 = vmatpush1.msra.mxu0 0.0
  %706 = vmatprep.subr.mxu0 0.0
  %707 = vmatpush1.msra.mxu0 0.0
  %708 = vmatprep.subr.mxu0 0.0
  %709 = vmatpush1.msra.mxu0 0.0
  %710 = vmatprep.subr.mxu0 0.0
  %711 = vmatpush1.msra.mxu0 0.0
  %712 = vmatprep.subr.mxu0 0.0
  %713 = vmatpush1.msra.mxu0 0.0
  %714 = vmatprep.subr.mxu0 0.0
  %715 = vmatpush1.msra.mxu0 0.0
  %716 = vmatprep.subr.mxu0 0.0
  %717 = vmatpush1.msra.mxu0 0.0
  %718 = vmatprep.subr.mxu0 0.0
  %719 = vmatpush1.msra.mxu0 0.0
  %720 = vmatprep.mubr.f32.mxu0 0.0
  %721 = vmatmul.mubr.f32.gmra.mrb[0].mxu0 %v578
  %v722 = vpop.f32.mrb[0].mxu0
  %v723 = vadd.f32 0.0, %v722
  %v724 = vpop.f32.mrb[0].mxu0
  %725 = vdwg.mxu0
  %v726 = vadd.f32 %v723, %v238
  %v727 = vadd.f32 %v582, %v652
  %v728 = vxor.u32 %v727, 2147483648
  %v729 = vmul.f32 %v728, 1.442695
  %v730 = vpow.pop %v729
  %v731 = vadd.f32 %v730, 1.0
  %v732 = vrcp.pop %v731
  %v733 = vmul.f32 1.0, %v732
  %v734 = vadd.f32 %v583, %v654
  %v735 = vxor.u32 %v734, 2147483648
  %v736 = vmul.f32 %v735, 1.442695
  %v737 = vpow.pop %v736
  %v738 = vadd.f32 %v737, 1.0
  %v739 = vrcp.pop %v738
  %v740 = vmul.f32 1.0, %v739
  %v741 = vmul.f32 %v733, %v726
  %v742 = vadd.f32 %v584, %v741
  %v743 = vtanh.pop %v742
  %v744 = vsub.f32 1.0, %v740
  %v745 = vmul.f32 %v744, %v743
  %v746 = vmul.f32 %v740, %v578
  %v747 = vadd.f32 %v745, %v746
  %s748 = smul.u32 3, 3
  %s749 = smul.addr %s748, 8
  %s750 = scalar_lea.vmem [#allocation3], %s749
  %v751 = vld [vmem:[%s750] sm:$0xff]
  %v752 = vld [vmem:[%s750 + $0x8] sm:$0xff]
  %v753 = vld [vmem:[%s750 + $0x10] sm:$0xff]
  %754 = vmatprep.subr.mxu0 %v186
  %755 = vmatpush1.msra.mxu0 %v185
  %756 = vmatprep.subr.mxu0 %v189
  %757 = vmatpush1.msra.mxu0 %v188
  %758 = vmatprep.subr.mxu0 %v192
  %759 = vmatpush1.msra.mxu0 %v191
  %760 = vmatprep.subr.mxu0 %v195
  %761 = vmatpush1.msra.mxu0 %v194
  %762 = vmatprep.subr.mxu0 %v198
  %763 = vmatpush1.msra.mxu0 %v197
  %764 = vmatprep.subr.mxu0 %v201
  %765 = vmatpush1.msra.mxu0 %v200
  %766 = vmatprep.subr.mxu0 %v204
  %767 = vmatpush1.msra.mxu0 %v203
  %768 = vmatprep.subr.mxu0 %v207
  %769 = vmatpush1.msra.mxu0 %v206
  %770 = vmatprep.subr.mxu0 %v210
  %771 = vmatpush1.msra.mxu0 %v209
  %772 = vmatprep.subr.mxu0 %v213
  %773 = vmatpush1.msra.mxu0 %v212
  %774 = vmatprep.subr.mxu0 %v216
  %775 = vmatpush1.msra.mxu0 %v215
  %776 = vmatprep.subr.mxu0 %v219
  %777 = vmatpush1.msra.mxu0 %v218
  %778 = vmatprep.subr.mxu0 %v222
  %779 = vmatpush1.msra.mxu0 %v221
  %780 = vmatprep.subr.mxu0 %v225
  %781 = vmatpush1.msra.mxu0 %v224
  %782 = vmatprep.subr.mxu0 %v228
  %783 = vmatpush1.msra.mxu0 %v227
  %784 = vmatprep.subr.mxu0 %v231
  %785 = vmatpush1.msra.mxu0 %v230
  %786 = vmatprep.subr.mxu0 0.0
  %787 = vmatpush1.msra.mxu0 0.0
  %788 = vmatprep.subr.mxu0 0.0
  %789 = vmatpush1.msra.mxu0 0.0
  %790 = vmatprep.subr.mxu0 0.0
  %791 = vmatpush1.msra.mxu0 0.0
  %792 = vmatprep.subr.mxu0 0.0
  %793 = vmatpush1.msra.mxu0 0.0
  %794 = vmatprep.subr.mxu0 0.0
  %795 = vmatpush1.msra.mxu0 0.0
  %796 = vmatprep.subr.mxu0 0.0
  %797 = vmatpush1.msra.mxu0 0.0
  %798 = vmatprep.subr.mxu0 0.0
  %799 = vmatpush1.msra.mxu0 0.0
  %800 = vmatprep.subr.mxu0 0.0
  %801 = vmatpush1.msra.mxu0 0.0
  %802 = vmatprep.subr.mxu0 0.0
  %803 = vmatpush1.msra.mxu0 0.0
  %804 = vmatprep.subr.mxu0 0.0
  %805 = vmatpush1.msra.mxu0 0.0
  %806 = vmatprep.subr.mxu0 0.0
  %807 = vmatpush1.msra.mxu0 0.0
  %808 = vmatprep.subr.mxu0 0.0
  %809 = vmatpush1.msra.mxu0 0.0
  %810 = vmatprep.subr.mxu0 0.0
  %811 = vmatpush1.msra.mxu0 0.0
  %812 = vmatprep.subr.mxu0 0.0
  %813 = vmatpush1.msra.mxu0 0.0
  %814 = vmatprep.subr.mxu0 0.0
  %815 = vmatpush1.msra.mxu0 0.0
  %816 = vmatprep.subr.mxu0 0.0
  %817 = vmatpush1.msra.mxu0 0.0
  %818 = vmatprep.mubr.f32.mxu0 0.0
  %819 = vmatmul.mubr.f32.gmra.mrb[0].mxu0 %v747
  %v820 = vpop.f32.mrb[0].mxu0
  %v821 = vadd.f32 0.0, %v820
  %v822 = vpop.f32.mrb[0].mxu0
  %v823 = vadd.f32 0.0, %v822
  %824 = vdwg.mxu0
  %825 = vmatprep.subr.mxu0 0.0
  %826 = vmatpush1.msra.mxu0 %v187
  %827 = vmatprep.subr.mxu0 0.0
  %828 = vmatpush1.msra.mxu0 %v190
  %829 = vmatprep.subr.mxu0 0.0
  %830 = vmatpush1.msra.mxu0 %v193
  %831 = vmatprep.subr.mxu0 0.0
  %832 = vmatpush1.msra.mxu0 %v196
  %833 = vmatprep.subr.mxu0 0.0
  %834 = vmatpush1.msra.mxu0 %v199
  %835 = vmatprep.subr.mxu0 0.0
  %836 = vmatpush1.msra.mxu0 %v202
  %837 = vmatprep.subr.mxu0 0.0
  %838 = vmatpush1.msra.mxu0 %v205
  %839 = vmatprep.subr.mxu0 0.0
  %840 = vmatpush1.msra.mxu0 %v208
  %841 = vmatprep.subr.mxu0 0.0
  %842 = vmatpush1.msra.mxu0 %v211
  %843 = vmatprep.subr.mxu0 0.0
  %844 = vmatpush1.msra.mxu0 %v214
  %845 = vmatprep.subr.mxu0 0.0
  %846 = vmatpush1.msra.mxu0 %v217
  %847 = vmatprep.subr.mxu0 0.0
  %848 = vmatpush1.msra.mxu0 %v220
  %849 = vmatprep.subr.mxu0 0.0
  %850 = vmatpush1.msra.mxu0 %v223
  %851 = vmatprep.subr.mxu0 0.0
  %852 = vmatpush1.msra.mxu0 %v226
  %853 = vmatprep.subr.mxu0 0.0
  %854 = vmatpush1.msra.mxu0 %v229
  %855 = vmatprep.subr.mxu0 0.0
  %856 = vmatpush1.msra.mxu0 %v232
  %857 = vmatprep.subr.mxu0 0.0
  %858 = vmatpush1.msra.mxu0 0.0
  %859 = vmatprep.subr.mxu0 0.0
  %860 = vmatpush1.msra.mxu0 0.0
  %861 = vmatprep.subr.mxu0 0.0
  %862 = vmatpush1.msra.mxu0 0.0
  %863 = vmatprep.subr.mxu0 0.0
  %864 = vmatpush1.msra.mxu0 0.0
  %865 = vmatprep.subr.mxu0 0.0
  %866 = vmatpush1.msra.mxu0 0.0
  %867 = vmatprep.subr.mxu0 0.0
  %868 = vmatpush1.msra.mxu0 0.0
  %869 = vmatprep.subr.mxu0 0.0
  %870 = vmatpush1.msra.mxu0 0.0
  %871 = vmatprep.subr.mxu0 0.0
  %872 = vmatpush1.msra.mxu0 0.0
  %873 = vmatprep.subr.mxu0 0.0
  %874 = vmatpush1.msra.mxu0 0.0
  %875 = vmatprep.subr.mxu0 0.0
  %876 = vmatpush1.msra.mxu0 0.0
  %877 = vmatprep.subr.mxu0 0.0
  %878 = vmatpush1.msra.mxu0 0.0
  %879 = vmatprep.subr.mxu0 0.0
  %880 = vmatpush1.msra.mxu0 0.0
  %881 = vmatprep.subr.mxu0 0.0
  %882 = vmatpush1.msra.mxu0 0.0
  %883 = vmatprep.subr.mxu0 0.0
  %884 = vmatpush1.msra.mxu0 0.0
  %885 = vmatprep.subr.mxu0 0.0
  %886 = vmatpush1.msra.mxu0 0.0
  %887 = vmatprep.subr.mxu0 0.0
  %888 = vmatpush1.msra.mxu0 0.0
  %889 = vmatprep.mubr.f32.mxu0 0.0
  %890 = vmatmul.mubr.f32.gmra.mrb[0].mxu0 %v747
  %v891 = vpop.f32.mrb[0].mxu0
  %v892 = vadd.f32 0.0, %v891
  %v893 = vpop.f32.mrb[0].mxu0
  %894 = vdwg.mxu0
  %v895 = vadd.f32 %v892, %v238
  %v896 = vadd.f32 %v751, %v821
  %v897 = vxor.u32 %v896, 2147483648
  %v898 = vmul.f32 %v897, 1.442695
  %v899 = vpow.pop %v898
  %v900 = vadd.f32 %v899, 1.0
  %v901 = vrcp.pop %v900
  %v902 = vmul.f32 1.0, %v901
  %v903 = vadd.f32 %v752, %v823
  %v904 = vxor.u32 %v903, 2147483648
  %v905 = vmul.f32 %v904, 1.442695
  %v906 = vpow.pop %v905
  %v907 = vadd.f32 %v906, 1.0
  %v908 = vrcp.pop %v907
  %v909 = vmul.f32 1.0, %v908
  %v910 = vmul.f32 %v902, %v895
  %v911 = vadd.f32 %v753, %v910
  %v912 = vtanh.pop %v911
  %v913 = vsub.f32 1.0, %v909
  %v914 = vmul.f32 %v913, %v912
  %v915 = vmul.f32 %v909, %v747
  %v916 = vadd.f32 %v914, %v915
  %s917 = smul.u32 4, 3
  %s918 = smul.addr %s917, 8
  %s919 = scalar_lea.vmem [#allocation3], %s918
  %v920 = vld [vmem:[%s919] sm:$0xff]
  %v921 = vld [vmem:[%s919 + $0x8] sm:$0xff]
  %v922 = vld [vmem:[%s919 + $0x10] sm:$0xff]
  %923 = vmatprep.subr.mxu0 %v186
  %924 = vmatpush1.msra.mxu0 %v185
  %925 = vmatprep.subr.mxu0 %v189
  %926 = vmatpush1.msra.mxu0 %v188
  %927 = vmatprep.subr.mxu0 %v192
  %928 = vmatpush1.msra.mxu0 %v191
  %929 = vmatprep.subr.mxu0 %v195
  %930 = vmatpush1.msra.mxu0 %v194
  %931 = vmatprep.subr.mxu0 %v198
  %932 = vmatpush1.msra.mxu0 %v197
  %933 = vmatprep.subr.mxu0 %v201
  %934 = vmatpush1.msra.mxu0 %v200
  %935 = vmatprep.subr.mxu0 %v204
  %936 = vmatpush1.msra.mxu0 %v203
  %937 = vmatprep.subr.mxu0 %v207
  %938 = vmatpush1.msra.mxu0 %v206
  %939 = vmatprep.subr.mxu0 %v210
  %940 = vmatpush1.msra.mxu0 %v209
  %941 = vmatprep.subr.mxu0 %v213
  %942 = vmatpush1.msra.mxu0 %v212
  %943 = vmatprep.subr.mxu0 %v216
  %944 = vmatpush1.msra.mxu0 %v215
  %945 = vmatprep.subr.mxu0 %v219
  %946 = vmatpush1.msra.mxu0 %v218
  %947 = vmatprep.subr.mxu0 %v222
  %948 = vmatpush1.msra.mxu0 %v221
  %949 = vmatprep.subr.mxu0 %v225
  %950 = vmatpush1.msra.mxu0 %v224
  %951 = vmatprep.subr.mxu0 %v228
  %952 = vmatpush1.msra.mxu0 %v227
  %953 = vmatprep.subr.mxu0 %v231
  %954 = vmatpush1.msra.mxu0 %v230
  %955 = vmatprep.subr.mxu0 0.0
  %956 = vmatpush1.msra.mxu0 0.0
  %957 = vmatprep.subr.mxu0 0.0
  %958 = vmatpush1.msra.mxu0 0.0
  %959 = vmatprep.subr.mxu0 0.0
  %960 = vmatpush1.msra.mxu0 0.0
  %961 = vmatprep.subr.mxu0 0.0
  %962 = vmatpush1.msra.mxu0 0.0
  %963 = vmatprep.subr.mxu0 0.0
  %964 = vmatpush1.msra.mxu0 0.0
  %965 = vmatprep.subr.mxu0 0.0
  %966 = vmatpush1.msra.mxu0 0.0
  %967 = vmatprep.subr.mxu0 0.0
  %968 = vmatpush1.msra.mxu0 0.0
  %969 = vmatprep.subr.mxu0 0.0
  %970 = vmatpush1.msra.mxu0 0.0
  %971 = vmatprep.subr.mxu0 0.0
  %972 = vmatpush1.msra.mxu0 0.0
  %973 = vmatprep.subr.mxu0 0.0
  %974 = vmatpush1.msra.mxu0 0.0
  %975 = vmatprep.subr.mxu0 0.0
  %976 = vmatpush1.msra.mxu0 0.0
  %977 = vmatprep.subr.mxu0 0.0
  %978 = vmatpush1.msra.mxu0 0.0
  %979 = vmatprep.subr.mxu0 0.0
  %980 = vmatpush1.msra.mxu0 0.0
  %981 = vmatprep.subr.mxu0 0.0
  %982 = vmatpush1.msra.mxu0 0.0
  %983 = vmatprep.subr.mxu0 0.0
  %984 = vmatpush1.msra.mxu0 0.0
  %985 = vmatprep.subr.mxu0 0.0
  %986 = vmatpush1.msra.mxu0 0.0
  %987 = vmatprep.mubr.f32.mxu0 0.0
  %988 = vmatmul.mubr.f32.gmra.mrb[0].mxu0 %v916
  %v989 = vpop.f32.mrb[0].mxu0
  %v990 = vadd.f32 0.0, %v989
  %v991 = vpop.f32.mrb[0].mxu0
  %v992 = vadd.f32 0.0, %v991
  %993 = vdwg.mxu0
  %994 = vmatprep.subr.mxu0 0.0
  %995 = vmatpush1.msra.mxu0 %v187
  %996 = vmatprep.subr.mxu0 0.0
  %997 = vmatpush1.msra.mxu0 %v190
  %998 = vmatprep.subr.mxu0 0.0
  %999 = vmatpush1.msra.mxu0 %v193
  %1000 = vmatprep.subr.mxu0 0.0
  %1001 = vmatpush1.msra.mxu0 %v196
  %1002 = vmatprep.subr.mxu0 0.0
  %1003 = vmatpush1.msra.mxu0 %v199
  %1004 = vmatprep.subr.mxu0 0.0
  %1005 = vmatpush1.msra.mxu0 %v202
  %1006 = vmatprep.subr.mxu0 0.0
  %1007 = vmatpush1.msra.mxu0 %v205
  %1008 = vmatprep.subr.mxu0 0.0
  %1009 = vmatpush1.msra.mxu0 %v208
  %1010 = vmatprep.subr.mxu0 0.0
  %1011 = vmatpush1.msra.mxu0 %v211
  %1012 = vmatprep.subr.mxu0 0.0
  %1013 = vmatpush1.msra.mxu0 %v214
  %1014 = vmatprep.subr.mxu0 0.0
  %1015 = vmatpush1.msra.mxu0 %v217
  %1016 = vmatprep.subr.mxu0 0.0
  %1017 = vmatpush1.msra.mxu0 %v220
  %1018 = vmatprep.subr.mxu0 0.0
  %1019 = vmatpush1.msra.mxu0 %v223
  %1020 = vmatprep.subr.mxu0 0.0
  %1021 = vmatpush1.msra.mxu0 %v226
  %1022 = vmatprep.subr.mxu0 0.0
  %1023 = vmatpush1.msra.mxu0 %v229
  %1024 = vmatprep.subr.mxu0 0.0
  %1025 = vmatpush1.msra.mxu0 %v232
  %1026 = vmatprep.subr.mxu0 0.0
  %1027 = vmatpush1.msra.mxu0 0.0
  %1028 = vmatprep.subr.mxu0 0.0
  %1029 = vmatpush1.msra.mxu0 0.0
  %1030 = vmatprep.subr.mxu0 0.0
  %1031 = vmatpush1.msra.mxu0 0.0
  %1032 = vmatprep.subr.mxu0 0.0
  %1033 = vmatpush1.msra.mxu0 0.0
  %1034 = vmatprep.subr.mxu0 0.0
  %1035 = vmatpush1.msra.mxu0 0.0
  %1036 = vmatprep.subr.mxu0 0.0
  %1037 = vmatpush1.msra.mxu0 0.0
  %1038 = vmatprep.subr.mxu0 0.0
  %1039 = vmatpush1.msra.mxu0 0.0
  %1040 = vmatprep.subr.mxu0 0.0
  %1041 = vmatpush1.msra.mxu0 0.0
  %1042 = vmatprep.subr.mxu0 0.0
  %1043 = vmatpush1.msra.mxu0 0.0
  %1044 = vmatprep.subr.mxu0 0.0
  %1045 = vmatpush1.msra.mxu0 0.0
  %1046 = vmatprep.subr.mxu0 0.0
  %1047 = vmatpush1.msra.mxu0 0.0
  %1048 = vmatprep.subr.mxu0 0.0
  %1049 = vmatpush1.msra.mxu0 0.0
  %1050 = vmatprep.subr.mxu0 0.0
  %1051 = vmatpush1.msra.mxu0 0.0
  %1052 = vmatprep.subr.mxu0 0.0
  %1053 = vmatpush1.msra.mxu0 0.0
  %1054 = vmatprep.subr.mxu0 0.0
  %1055 = vmatpush1.msra.mxu0 0.0
  %1056 = vmatprep.subr.mxu0 0.0
  %1057 = vmatpush1.msra.mxu0 0.0
  %1058 = vmatprep.mubr.f32.mxu0 0.0
  %1059 = vmatmul.mubr.f32.gmra.mrb[0].mxu0 %v916
  %v1060 = vpop.f32.mrb[0].mxu0
  %v1061 = vadd.f32 0.0, %v1060
  %v1062 = vpop.f32.mrb[0].mxu0
  %1063 = vdwg.mxu0
  %v1064 = vadd.f32 %v1061, %v238
  %v1065 = vadd.f32 %v920, %v990
  %v1066 = vxor.u32 %v1065, 2147483648
  %v1067 = vmul.f32 %v1066, 1.442695
  %v1068 = vpow.pop %v1067
  %v1069 = vadd.f32 %v1068, 1.0
  %v1070 = vrcp.pop %v1069
  %v1071 = vmul.f32 1.0, %v1070
  %v1072 = vadd.f32 %v921, %v992
  %v1073 = vxor.u32 %v1072, 2147483648
  %v1074 = vmul.f32 %v1073, 1.442695
  %v1075 = vpow.pop %v1074
  %v1076 = vadd.f32 %v1075, 1.0
  %v1077 = vrcp.pop %v1076
  %v1078 = vmul.f32 1.0, %v1077
  %v1079 = vmul.f32 %v1071, %v1064
  %v1080 = vadd.f32 %v922, %v1079
  %v1081 = vtanh.pop %v1080
  %v1082 = vsub.f32 1.0, %v1078
  %v1083 = vmul.f32 %v1082, %v1081
  %v1084 = vmul.f32 %v1078, %v916
  %v1085 = vadd.f32 %v1083, %v1084
  %s1086 = smul.u32 5, 3
  %s1087 = smul.addr %s1086, 8
  %s1088 = scalar_lea.vmem [#allocation3], %s1087
  %v1089 = vld [vmem:[%s1088] sm:$0xff]
  %v1090 = vld [vmem:[%s1088 + $0x8] sm:$0xff]
  %v1091 = vld [vmem:[%s1088 + $0x10] sm:$0xff]
  %1092 = vmatprep.subr.mxu0 %v186
  %1093 = vmatpush1.msra.mxu0 %v185
  %1094 = vmatprep.subr.mxu0 %v189
  %1095 = vmatpush1.msra.mxu0 %v188
  %1096 = vmatprep.subr.mxu0 %v192
  %1097 = vmatpush1.msra.mxu0 %v191
  %1098 = vmatprep.subr.mxu0 %v195
  %1099 = vmatpush1.msra.mxu0 %v194
  %1100 = vmatprep.subr.mxu0 %v198
  %1101 = vmatpush1.msra.mxu0 %v197
  %1102 = vmatprep.subr.mxu0 %v201
  %1103 = vmatpush1.msra.mxu0 %v200
  %1104 = vmatprep.subr.mxu0 %v204
  %1105 = vmatpush1.msra.mxu0 %v203
  %1106 = vmatprep.subr.mxu0 %v207
  %1107 = vmatpush1.msra.mxu0 %v206
  %1108 = vmatprep.subr.mxu0 %v210
  %1109 = vmatpush1.msra.mxu0 %v209
  %1110 = vmatprep.subr.mxu0 %v213
  %1111 = vmatpush1.msra.mxu0 %v212
  %1112 = vmatprep.subr.mxu0 %v216
  %1113 = vmatpush1.msra.mxu0 %v215
  %1114 = vmatprep.subr.mxu0 %v219
  %1115 = vmatpush1.msra.mxu0 %v218
  %1116 = vmatprep.subr.mxu0 %v222
  %1117 = vmatpush1.msra.mxu0 %v221
  %1118 = vmatprep.subr.mxu0 %v225
  %1119 = vmatpush1.msra.mxu0 %v224
  %1120 = vmatprep.subr.mxu0 %v228
  %1121 = vmatpush1.msra.mxu0 %v227
  %1122 = vmatprep.subr.mxu0 %v231
  %1123 = vmatpush1.msra.mxu0 %v230
  %1124 = vmatprep.subr.mxu0 0.0
  %1125 = vmatpush1.msra.mxu0 0.0
  %1126 = vmatprep.subr.mxu0 0.0
  %1127 = vmatpush1.msra.mxu0 0.0
  %1128 = vmatprep.subr.mxu0 0.0
  %1129 = vmatpush1.msra.mxu0 0.0
  %1130 = vmatprep.subr.mxu0 0.0
  %1131 = vmatpush1.msra.mxu0 0.0
  %1132 = vmatprep.subr.mxu0 0.0
  %1133 = vmatpush1.msra.mxu0 0.0
  %1134 = vmatprep.subr.mxu0 0.0
  %1135 = vmatpush1.msra.mxu0 0.0
  %1136 = vmatprep.subr.mxu0 0.0
  %1137 = vmatpush1.msra.mxu0 0.0
  %1138 = vmatprep.subr.mxu0 0.0
  %1139 = vmatpush1.msra.mxu0 0.0
  %1140 = vmatprep.subr.mxu0 0.0
  %1141 = vmatpush1.msra.mxu0 0.0
  %1142 = vmatprep.subr.mxu0 0.0
  %1143 = vmatpush1.msra.mxu0 0.0
  %1144 = vmatprep.subr.mxu0 0.0
  %1145 = vmatpush1.msra.mxu0 0.0
  %1146 = vmatprep.subr.mxu0 0.0
  %1147 = vmatpush1.msra.mxu0 0.0
  %1148 = vmatprep.subr.mxu0 0.0
  %1149 = vmatpush1.msra.mxu0 0.0
  %1150 = vmatprep.subr.mxu0 0.0
  %1151 = vmatpush1.msra.mxu0 0.0
  %1152 = vmatprep.subr.mxu0 0.0
  %1153 = vmatpush1.msra.mxu0 0.0
  %1154 = vmatprep.subr.mxu0 0.0
  %1155 = vmatpush1.msra.mxu0 0.0
  %1156 = vmatprep.mubr.f32.mxu0 0.0
  %1157 = vmatmul.mubr.f32.gmra.mrb[0].mxu0 %v1085
  %v1158 = vpop.f32.mrb[0].mxu0
  %v1159 = vadd.f32 0.0, %v1158
  %v1160 = vpop.f32.mrb[0].mxu0
  %v1161 = vadd.f32 0.0, %v1160
  %1162 = vdwg.mxu0
  %1163 = vmatprep.subr.mxu0 0.0
  %1164 = vmatpush1.msra.mxu0 %v187
  %1165 = vmatprep.subr.mxu0 0.0
  %1166 = vmatpush1.msra.mxu0 %v190
  %1167 = vmatprep.subr.mxu0 0.0
  %1168 = vmatpush1.msra.mxu0 %v193
  %1169 = vmatprep.subr.mxu0 0.0
  %1170 = vmatpush1.msra.mxu0 %v196
  %1171 = vmatprep.subr.mxu0 0.0
  %1172 = vmatpush1.msra.mxu0 %v199
  %1173 = vmatprep.subr.mxu0 0.0
  %1174 = vmatpush1.msra.mxu0 %v202
  %1175 = vmatprep.subr.mxu0 0.0
  %1176 = vmatpush1.msra.mxu0 %v205
  %1177 = vmatprep.subr.mxu0 0.0
  %1178 = vmatpush1.msra.mxu0 %v208
  %1179 = vmatprep.subr.mxu0 0.0
  %1180 = vmatpush1.msra.mxu0 %v211
  %1181 = vmatprep.subr.mxu0 0.0
  %1182 = vmatpush1.msra.mxu0 %v214
  %1183 = vmatprep.subr.mxu0 0.0
  %1184 = vmatpush1.msra.mxu0 %v217
  %1185 = vmatprep.subr.mxu0 0.0
  %1186 = vmatpush1.msra.mxu0 %v220
  %1187 = vmatprep.subr.mxu0 0.0
  %1188 = vmatpush1.msra.mxu0 %v223
  %1189 = vmatprep.subr.mxu0 0.0
  %1190 = vmatpush1.msra.mxu0 %v226
  %1191 = vmatprep.subr.mxu0 0.0
  %1192 = vmatpush1.msra.mxu0 %v229
  %1193 = vmatprep.subr.mxu0 0.0
  %1194 = vmatpush1.msra.mxu0 %v232
  %1195 = vmatprep.subr.mxu0 0.0
  %1196 = vmatpush1.msra.mxu0 0.0
  %1197 = vmatprep.subr.mxu0 0.0
  %1198 = vmatpush1.msra.mxu0 0.0
  %1199 = vmatprep.subr.mxu0 0.0
  %1200 = vmatpush1.msra.mxu0 0.0
  %1201 = vmatprep.subr.mxu0 0.0
  %1202 = vmatpush1.msra.mxu0 0.0
  %1203 = vmatprep.subr.mxu0 0.0
  %1204 = vmatpush1.msra.mxu0 0.0
  %1205 = vmatprep.subr.mxu0 0.0
  %1206 = vmatpush1.msra.mxu0 0.0
  %1207 = vmatprep.subr.mxu0 0.0
  %1208 = vmatpush1.msra.mxu0 0.0
  %1209 = vmatprep.subr.mxu0 0.0
  %1210 = vmatpush1.msra.mxu0 0.0
  %1211 = vmatprep.subr.mxu0 0.0
  %1212 = vmatpush1.msra.mxu0 0.0
  %1213 = vmatprep.subr.mxu0 0.0
  %1214 = vmatpush1.msra.mxu0 0.0
  %1215 = vmatprep.subr.mxu0 0.0
  %1216 = vmatpush1.msra.mxu0 0.0
  %1217 = vmatprep.subr.mxu0 0.0
  %1218 = vmatpush1.msra.mxu0 0.0
  %1219 = vmatprep.subr.mxu0 0.0
  %1220 = vmatpush1.msra.mxu0 0.0
  %1221 = vmatprep.subr.mxu0 0.0
  %1222 = vmatpush1.msra.mxu0 0.0
  %1223 = vmatprep.subr.mxu0 0.0
  %1224 = vmatpush1.msra.mxu0 0.0
  %1225 = vmatprep.subr.mxu0 0.0
  %1226 = vmatpush1.msra.mxu0 0.0
  %1227 = vmatprep.mubr.f32.mxu0 0.0
  %1228 = vmatmul.mubr.f32.gmra.mrb[0].mxu0 %v1085
  %v1229 = vpop.f32.mrb[0].mxu0
  %v1230 = vadd.f32 0.0, %v1229
  %v1231 = vpop.f32.mrb[0].mxu0
  %1232 = vdwg.mxu0
  %v1233 = vadd.f32 %v1230, %v238
  %v1234 = vadd.f32 %v1089, %v1159
  %v1235 = vxor.u32 %v1234, 2147483648
  %v1236 = vmul.f32 %v1235, 1.442695
  %v1237 = vpow.pop %v1236
  %v1238 = vadd.f32 %v1237, 1.0
  %v1239 = vrcp.pop %v1238
  %v1240 = vmul.f32 1.0, %v1239
  %v1241 = vadd.f32 %v1090, %v1161
  %v1242 = vxor.u32 %v1241, 2147483648
  %v1243 = vmul.f32 %v1242, 1.442695
  %v1244 = vpow.pop %v1243
  %v1245 = vadd.f32 %v1244, 1.0
  %v1246 = vrcp.pop %v1245
  %v1247 = vmul.f32 1.0, %v1246
  %v1248 = vmul.f32 %v1240, %v1233
  %v1249 = vadd.f32 %v1091, %v1248
  %v1250 = vtanh.pop %v1249
  %v1251 = vsub.f32 1.0, %v1247
  %v1252 = vmul.f32 %v1251, %v1250
  %v1253 = vmul.f32 %v1247, %v1085
  %v1254 = vadd.f32 %v1252, %v1253
  %s1255 = smul.u32 6, 3
  %s1256 = smul.addr %s1255, 8
  %s1257 = scalar_lea.vmem [#allocation3], %s1256
  %v1258 = vld [vmem:[%s1257] sm:$0xff]
  %v1259 = vld [vmem:[%s1257 + $0x8] sm:$0xff]
  %v1260 = vld [vmem:[%s1257 + $0x10] sm:$0xff]
  %1261 = vmatprep.subr.mxu0 %v186
  %1262 = vmatpush1.msra.mxu0 %v185
  %1263 = vmatprep.subr.mxu0 %v189
  %1264 = vmatpush1.msra.mxu0 %v188
  %1265 = vmatprep.subr.mxu0 %v192
  %1266 = vmatpush1.msra.mxu0 %v191
  %1267 = vmatprep.subr.mxu0 %v195
  %1268 = vmatpush1.msra.mxu0 %v194
  %1269 = vmatprep.subr.mxu0 %v198
  %1270 = vmatpush1.msra.mxu0 %v197
  %1271 = vmatprep.subr.mxu0 %v201
  %1272 = vmatpush1.msra.mxu0 %v200
  %1273 = vmatprep.subr.mxu0 %v204
  %1274 = vmatpush1.msra.mxu0 %v203
  %1275 = vmatprep.subr.mxu0 %v207
  %1276 = vmatpush1.msra.mxu0 %v206
  %1277 = vmatprep.subr.mxu0 %v210
  %1278 = vmatpush1.msra.mxu0 %v209
  %1279 = vmatprep.subr.mxu0 %v213
  %1280 = vmatpush1.msra.mxu0 %v212
  %1281 = vmatprep.subr.mxu0 %v216
  %1282 = vmatpush1.msra.mxu0 %v215
  %1283 = vmatprep.subr.mxu0 %v219
  %1284 = vmatpush1.msra.mxu0 %v218
  %1285 = vmatprep.subr.mxu0 %v222
  %1286 = vmatpush1.msra.mxu0 %v221
  %1287 = vmatprep.subr.mxu0 %v225
  %1288 = vmatpush1.msra.mxu0 %v224
  %1289 = vmatprep.subr.mxu0 %v228
  %1290 = vmatpush1.msra.mxu0 %v227
  %1291 = vmatprep.subr.mxu0 %v231
  %1292 = vmatpush1.msra.mxu0 %v230
  %1293 = vmatprep.subr.mxu0 0.0
  %1294 = vmatpush1.msra.mxu0 0.0
  %1295 = vmatprep.subr.mxu0 0.0
  %1296 = vmatpush1.msra.mxu0 0.0
  %1297 = vmatprep.subr.mxu0 0.0
  %1298 = vmatpush1.msra.mxu0 0.0
  %1299 = vmatprep.subr.mxu0 0.0
  %1300 = vmatpush1.msra.mxu0 0.0
  %1301 = vmatprep.subr.mxu0 0.0
  %1302 = vmatpush1.msra.mxu0 0.0
  %1303 = vmatprep.subr.mxu0 0.0
  %1304 = vmatpush1.msra.mxu0 0.0
  %1305 = vmatprep.subr.mxu0 0.0
  %1306 = vmatpush1.msra.mxu0 0.0
  %1307 = vmatprep.subr.mxu0 0.0
  %1308 = vmatpush1.msra.mxu0 0.0
  %1309 = vmatprep.subr.mxu0 0.0
  %1310 = vmatpush1.msra.mxu0 0.0
  %1311 = vmatprep.subr.mxu0 0.0
  %1312 = vmatpush1.msra.mxu0 0.0
  %1313 = vmatprep.subr.mxu0 0.0
  %1314 = vmatpush1.msra.mxu0 0.0
  %1315 = vmatprep.subr.mxu0 0.0
  %1316 = vmatpush1.msra.mxu0 0.0
  %1317 = vmatprep.subr.mxu0 0.0
  %1318 = vmatpush1.msra.mxu0 0.0
  %1319 = vmatprep.subr.mxu0 0.0
  %1320 = vmatpush1.msra.mxu0 0.0
  %1321 = vmatprep.subr.mxu0 0.0
  %1322 = vmatpush1.msra.mxu0 0.0
  %1323 = vmatprep.subr.mxu0 0.0
  %1324 = vmatpush1.msra.mxu0 0.0
  %1325 = vmatprep.mubr.f32.mxu0 0.0
  %1326 = vmatmul.mubr.f32.gmra.mrb[0].mxu0 %v1254
  %v1327 = vpop.f32.mrb[0].mxu0
  %v1328 = vadd.f32 0.0, %v1327
  %v1329 = vpop.f32.mrb[0].mxu0
  %v1330 = vadd.f32 0.0, %v1329
  %1331 = vdwg.mxu0
  %1332 = vmatprep.subr.mxu0 0.0
  %1333 = vmatpush1.msra.mxu0 %v187
  %1334 = vmatprep.subr.mxu0 0.0
  %1335 = vmatpush1.msra.mxu0 %v190
  %1336 = vmatprep.subr.mxu0 0.0
  %1337 = vmatpush1.msra.mxu0 %v193
  %1338 = vmatprep.subr.mxu0 0.0
  %1339 = vmatpush1.msra.mxu0 %v196
  %1340 = vmatprep.subr.mxu0 0.0
  %1341 = vmatpush1.msra.mxu0 %v199
  %1342 = vmatprep.subr.mxu0 0.0
  %1343 = vmatpush1.msra.mxu0 %v202
  %1344 = vmatprep.subr.mxu0 0.0
  %1345 = vmatpush1.msra.mxu0 %v205
  %1346 = vmatprep.subr.mxu0 0.0
  %1347 = vmatpush1.msra.mxu0 %v208
  %1348 = vmatprep.subr.mxu0 0.0
  %1349 = vmatpush1.msra.mxu0 %v211
  %1350 = vmatprep.subr.mxu0 0.0
  %1351 = vmatpush1.msra.mxu0 %v214
  %1352 = vmatprep.subr.mxu0 0.0
  %1353 = vmatpush1.msra.mxu0 %v217
  %1354 = vmatprep.subr.mxu0 0.0
  %1355 = vmatpush1.msra.mxu0 %v220
  %1356 = vmatprep.subr.mxu0 0.0
  %1357 = vmatpush1.msra.mxu0 %v223
  %1358 = vmatprep.subr.mxu0 0.0
  %1359 = vmatpush1.msra.mxu0 %v226
  %1360 = vmatprep.subr.mxu0 0.0
  %1361 = vmatpush1.msra.mxu0 %v229
  %1362 = vmatprep.subr.mxu0 0.0
  %1363 = vmatpush1.msra.mxu0 %v232
  %1364 = vmatprep.subr.mxu0 0.0
  %1365 = vmatpush1.msra.mxu0 0.0
  %1366 = vmatprep.subr.mxu0 0.0
  %1367 = vmatpush1.msra.mxu0 0.0
  %1368 = vmatprep.subr.mxu0 0.0
  %1369 = vmatpush1.msra.mxu0 0.0
  %1370 = vmatprep.subr.mxu0 0.0
  %1371 = vmatpush1.msra.mxu0 0.0
  %1372 = vmatprep.subr.mxu0 0.0
  %1373 = vmatpush1.msra.mxu0 0.0
  %1374 = vmatprep.subr.mxu0 0.0
  %1375 = vmatpush1.msra.mxu0 0.0
  %1376 = vmatprep.subr.mxu0 0.0
  %1377 = vmatpush1.msra.mxu0 0.0
  %1378 = vmatprep.subr.mxu0 0.0
  %1379 = vmatpush1.msra.mxu0 0.0
  %1380 = vmatprep.subr.mxu0 0.0
  %1381 = vmatpush1.msra.mxu0 0.0
  %1382 = vmatprep.subr.mxu0 0.0
  %1383 = vmatpush1.msra.mxu0 0.0
  %1384 = vmatprep.subr.mxu0 0.0
  %1385 = vmatpush1.msra.mxu0 0.0
  %1386 = vmatprep.subr.mxu0 0.0
  %1387 = vmatpush1.msra.mxu0 0.0
  %1388 = vmatprep.subr.mxu0 0.0
  %1389 = vmatpush1.msra.mxu0 0.0
  %1390 = vmatprep.subr.mxu0 0.0
  %1391 = vmatpush1.msra.mxu0 0.0
  %1392 = vmatprep.subr.mxu0 0.0
  %1393 = vmatpush1.msra.mxu0 0.0
  %1394 = vmatprep.subr.mxu0 0.0
  %1395 = vmatpush1.msra.mxu0 0.0
  %1396 = vmatprep.mubr.f32.mxu0 0.0
  %1397 = vmatmul.mubr.f32.gmra.mrb[0].mxu0 %v1254
  %v1398 = vpop.f32.mrb[0].mxu0
  %v1399 = vadd.f32 0.0, %v1398
  %v1400 = vpop.f32.mrb[0].mxu0
  %1401 = vdwg.mxu0
  %v1402 = vadd.f32 %v1399, %v238
  %v1403 = vadd.f32 %v1258, %v1328
  %v1404 = vxor.u32 %v1403, 2147483648
  %v1405 = vmul.f32 %v1404, 1.442695
  %v1406 = vpow.pop %v1405
  %v1407 = vadd.f32 %v1406, 1.0
  %v1408 = vrcp.pop %v1407
  %v1409 = vmul.f32 1.0, %v1408
  %v1410 = vadd.f32 %v1259, %v1330
  %v1411 = vxor.u32 %v1410, 2147483648
  %v1412 = vmul.f32 %v1411, 1.442695
  %v1413 = vpow.pop %v1412
  %v1414 = vadd.f32 %v1413, 1.0
  %v1415 = vrcp.pop %v1414
  %v1416 = vmul.f32 1.0, %v1415
  %v1417 = vmul.f32 %v1409, %v1402
  %v1418 = vadd.f32 %v1260, %v1417
  %v1419 = vtanh.pop %v1418
  %v1420 = vsub.f32 1.0, %v1416
  %v1421 = vmul.f32 %v1420, %v1419
  %v1422 = vmul.f32 %v1416, %v1254
  %v1423 = vadd.f32 %v1421, %v1422
  %s1424 = smul.u32 7, 3
  %s1425 = smul.addr %s1424, 8
  %s1426 = scalar_lea.vmem [#allocation3], %s1425
  %v1427 = vld [vmem:[%s1426] sm:$0xff]
  %v1428 = vld [vmem:[%s1426 + $0x8] sm:$0xff]
  %v1429 = vld [vmem:[%s1426 + $0x10] sm:$0xff]
  %1430 = vmatprep.subr.mxu0 %v186
  %1431 = vmatpush1.msra.mxu0 %v185
  %1432 = vmatprep.subr.mxu0 %v189
  %1433 = vmatpush1.msra.mxu0 %v188
  %1434 = vmatprep.subr.mxu0 %v192
  %1435 = vmatpush1.msra.mxu0 %v191
  %1436 = vmatprep.subr.mxu0 %v195
  %1437 = vmatpush1.msra.mxu0 %v194
  %1438 = vmatprep.subr.mxu0 %v198
  %1439 = vmatpush1.msra.mxu0 %v197
  %1440 = vmatprep.subr.mxu0 %v201
  %1441 = vmatpush1.msra.mxu0 %v200
  %1442 = vmatprep.subr.mxu0 %v204
  %1443 = vmatpush1.msra.mxu0 %v203
  %1444 = vmatprep.subr.mxu0 %v207
  %1445 = vmatpush1.msra.mxu0 %v206
  %1446 = vmatprep.subr.mxu0 %v210
  %1447 = vmatpush1.msra.mxu0 %v209
  %1448 = vmatprep.subr.mxu0 %v213
  %1449 = vmatpush1.msra.mxu0 %v212
  %1450 = vmatprep.subr.mxu0 %v216
  %1451 = vmatpush1.msra.mxu0 %v215
  %1452 = vmatprep.subr.mxu0 %v219
  %1453 = vmatpush1.msra.mxu0 %v218
  %1454 = vmatprep.subr.mxu0 %v222
  %1455 = vmatpush1.msra.mxu0 %v221
  %1456 = vmatprep.subr.mxu0 %v225
  %1457 = vmatpush1.msra.mxu0 %v224
  %1458 = vmatprep.subr.mxu0 %v228
  %1459 = vmatpush1.msra.mxu0 %v227
  %1460 = vmatprep.subr.mxu0 %v231
  %1461 = vmatpush1.msra.mxu0 %v230
  %1462 = vmatprep.subr.mxu0 0.0
  %1463 = vmatpush1.msra.mxu0 0.0
  %1464 = vmatprep.subr.mxu0 0.0
  %1465 = vmatpush1.msra.mxu0 0.0
  %1466 = vmatprep.subr.mxu0 0.0
  %1467 = vmatpush1.msra.mxu0 0.0
  %1468 = vmatprep.subr.mxu0 0.0
  %1469 = vmatpush1.msra.mxu0 0.0
  %1470 = vmatprep.subr.mxu0 0.0
  %1471 = vmatpush1.msra.mxu0 0.0
  %1472 = vmatprep.subr.mxu0 0.0
  %1473 = vmatpush1.msra.mxu0 0.0
  %1474 = vmatprep.subr.mxu0 0.0
  %1475 = vmatpush1.msra.mxu0 0.0
  %1476 = vmatprep.subr.mxu0 0.0
  %1477 = vmatpush1.msra.mxu0 0.0
  %1478 = vmatprep.subr.mxu0 0.0
  %1479 = vmatpush1.msra.mxu0 0.0
  %1480 = vmatprep.subr.mxu0 0.0
  %1481 = vmatpush1.msra.mxu0 0.0
  %1482 = vmatprep.subr.mxu0 0.0
  %1483 = vmatpush1.msra.mxu0 0.0
  %1484 = vmatprep.subr.mxu0 0.0
  %1485 = vmatpush1.msra.mxu0 0.0
  %1486 = vmatprep.subr.mxu0 0.0
  %1487 = vmatpush1.msra.mxu0 0.0
  %1488 = vmatprep.subr.mxu0 0.0
  %1489 = vmatpush1.msra.mxu0 0.0
  %1490 = vmatprep.subr.mxu0 0.0
  %1491 = vmatpush1.msra.mxu0 0.0
  %1492 = vmatprep.subr.mxu0 0.0
  %1493 = vmatpush1.msra.mxu0 0.0
  %1494 = vmatprep.mubr.f32.mxu0 0.0
  %1495 = vmatmul.mubr.f32.gmra.mrb[0].mxu0 %v1423
  %v1496 = vpop.f32.mrb[0].mxu0
  %v1497 = vadd.f32 0.0, %v1496
  %v1498 = vpop.f32.mrb[0].mxu0
  %v1499 = vadd.f32 0.0, %v1498
  %1500 = vdwg.mxu0
  %1501 = vmatprep.subr.mxu0 0.0
  %1502 = vmatpush1.msra.mxu0 %v187
  %1503 = vmatprep.subr.mxu0 0.0
  %1504 = vmatpush1.msra.mxu0 %v190
  %1505 = vmatprep.subr.mxu0 0.0
  %1506 = vmatpush1.msra.mxu0 %v193
  %1507 = vmatprep.subr.mxu0 0.0
  %1508 = vmatpush1.msra.mxu0 %v196
  %1509 = vmatprep.subr.mxu0 0.0
  %1510 = vmatpush1.msra.mxu0 %v199
  %1511 = vmatprep.subr.mxu0 0.0
  %1512 = vmatpush1.msra.mxu0 %v202
  %1513 = vmatprep.subr.mxu0 0.0
  %1514 = vmatpush1.msra.mxu0 %v205
  %1515 = vmatprep.subr.mxu0 0.0
  %1516 = vmatpush1.msra.mxu0 %v208
  %1517 = vmatprep.subr.mxu0 0.0
  %1518 = vmatpush1.msra.mxu0 %v211
  %1519 = vmatprep.subr.mxu0 0.0
  %1520 = vmatpush1.msra.mxu0 %v214
  %1521 = vmatprep.subr.mxu0 0.0
  %1522 = vmatpush1.msra.mxu0 %v217
  %1523 = vmatprep.subr.mxu0 0.0
  %1524 = vmatpush1.msra.mxu0 %v220
  %1525 = vmatprep.subr.mxu0 0.0
  %1526 = vmatpush1.msra.mxu0 %v223
  %1527 = vmatprep.subr.mxu0 0.0
  %1528 = vmatpush1.msra.mxu0 %v226
  %1529 = vmatprep.subr.mxu0 0.0
  %1530 = vmatpush1.msra.mxu0 %v229
  %1531 = vmatprep.subr.mxu0 0.0
  %1532 = vmatpush1.msra.mxu0 %v232
  %1533 = vmatprep.subr.mxu0 0.0
  %1534 = vmatpush1.msra.mxu0 0.0
  %1535 = vmatprep.subr.mxu0 0.0
  %1536 = vmatpush1.msra.mxu0 0.0
  %1537 = vmatprep.subr.mxu0 0.0
  %1538 = vmatpush1.msra.mxu0 0.0
  %1539 = vmatprep.subr.mxu0 0.0
  %1540 = vmatpush1.msra.mxu0 0.0
  %1541 = vmatprep.subr.mxu0 0.0
  %1542 = vmatpush1.msra.mxu0 0.0
  %1543 = vmatprep.subr.mxu0 0.0
  %1544 = vmatpush1.msra.mxu0 0.0
  %1545 = vmatprep.subr.mxu0 0.0
  %1546 = vmatpush1.msra.mxu0 0.0
  %1547 = vmatprep.subr.mxu0 0.0
  %1548 = vmatpush1.msra.mxu0 0.0
  %1549 = vmatprep.subr.mxu0 0.0
  %1550 = vmatpush1.msra.mxu0 0.0
  %1551 = vmatprep.subr.mxu0 0.0
  %1552 = vmatpush1.msra.mxu0 0.0
  %1553 = vmatprep.subr.mxu0 0.0
  %1554 = vmatpush1.msra.mxu0 0.0
  %1555 = vmatprep.subr.mxu0 0.0
  %1556 = vmatpush1.msra.mxu0 0.0
  %1557 = vmatprep.subr.mxu0 0.0
  %1558 = vmatpush1.msra.mxu0 0.0
  %1559 = vmatprep.subr.mxu0 0.0
  %1560 = vmatpush1.msra.mxu0 0.0
  %1561 = vmatprep.subr.mxu0 0.0
  %1562 = vmatpush1.msra.mxu0 0.0
  %1563 = vmatprep.subr.mxu0 0.0
  %1564 = vmatpush1.msra.mxu0 0.0
  %1565 = vmatprep.mubr.f32.mxu0 0.0
  %1566 = vmatmul.mubr.f32.gmra.mrb[0].mxu0 %v1423
  %v1567 = vpop.f32.mrb[0].mxu0
  %v1568 = vadd.f32 0.0, %v1567
  %v1569 = vpop.f32.mrb[0].mxu0
  %1570 = vdwg.mxu0
  %v1571 = vadd.f32 %v1568, %v238
  %v1572 = vadd.f32 %v1427, %v1497
  %v1573 = vxor.u32 %v1572, 2147483648
  %v1574 = vmul.f32 %v1573, 1.442695
  %v1575 = vpow.pop %v1574
  %v1576 = vadd.f32 %v1575, 1.0
  %v1577 = vrcp.pop %v1576
  %v1578 = vmul.f32 1.0, %v1577
  %v1579 = vadd.f32 %v1428, %v1499
  %v1580 = vxor.u32 %v1579, 2147483648
  %v1581 = vmul.f32 %v1580, 1.442695
  %v1582 = vpow.pop %v1581
  %v1583 = vadd.f32 %v1582, 1.0
  %v1584 = vrcp.pop %v1583
  %v1585 = vmul.f32 1.0, %v1584
  %v1586 = vmul.f32 %v1578, %v1571
  %v1587 = vadd.f32 %v1429, %v1586
  %v1588 = vtanh.pop %v1587
  %v1589 = vsub.f32 1.0, %v1585
  %v1590 = vmul.f32 %v1589, %v1588
  %v1591 = vmul.f32 %v1585, %v1423
  %v1592 = vadd.f32 %v1590, %v1591
  %1593 = vst [vmem:[#allocation2] sm:$0xff] %v1592
  // Predicated region
  $region34: #{my_gru_forward.1} parent=0 // pred_check
    %p1594 = pneg %p180
  $region35: #{my_gru_forward.1} parent=0 // pred_check_branch
    %1596 = sbr.rel (%p1594) target = $region37
  $region36: #{my_gru_forward.1} parent=0 // pred_region
    %v1597 = vld [vmem:[%s5] sm:$0xff]
    %v1598 = vld [vmem:[%s5 + $0x8] sm:$0xff]
    %v1599 = vld [vmem:[%s5 + $0x10] sm:$0xff]
    %v1600 = vld [vmem:[%s5 + $0x18] sm:$0xff]
    %v1601 = vld [vmem:[%s5 + $0x20] sm:$0xff]
    %v1602 = vld [vmem:[%s5 + $0x28] sm:$0xff]
    %v1603 = vld [vmem:[%s5 + $0x30] sm:$0xff]
    %v1604 = vld [vmem:[%s5 + $0x38] sm:$0xff]
    %v1605 = vld [vmem:[%s5 + $0x40] sm:$0xff]
    %v1606 = vld [vmem:[%s5 + $0x48] sm:$0xff]
    %v1607 = vld [vmem:[%s5 + $0x50] sm:$0xff]
    %v1608 = vld [vmem:[%s5 + $0x58] sm:$0xff]
    %v1609 = vld [vmem:[%s5 + $0x60] sm:$0xff]
    %v1610 = vld [vmem:[%s5 + $0x68] sm:$0xff]
    %v1611 = vld [vmem:[%s5 + $0x70] sm:$0xff]
    %v1612 = vld [vmem:[%s5 + $0x78] sm:$0xff]
    %v1613 = vld [vmem:[%s6] sm:$0x1]
    %v1615 = vlaneseq
    %v1616 = vshrl.u32 %v1615, 7
    %v1617 = vsub.s32 0, %v1616
    %v1618 = vrot.slane %v1613, %v1617
    %1620 = vmatprep.subr.mxu0 0.0
    %1621 = vmatpush1.msra.mxu0 %v1597
    %1622 = vmatprep.subr.mxu0 0.0
    %1623 = vmatpush1.msra.mxu0 %v1598
    %1624 = vmatprep.subr.mxu0 0.0
    %1625 = vmatpush1.msra.mxu0 %v1599
    %1626 = vmatprep.subr.mxu0 0.0
    %1627 = vmatpush1.msra.mxu0 %v1600
    %1628 = vmatprep.subr.mxu0 0.0
    %1629 = vmatpush1.msra.mxu0 %v1601
    %1630 = vmatprep.subr.mxu0 0.0
    %1631 = vmatpush1.msra.mxu0 %v1602
    %1632 = vmatprep.subr.mxu0 0.0
    %1633 = vmatpush1.msra.mxu0 %v1603
    %1634 = vmatprep.subr.mxu0 0.0
    %1635 = vmatpush1.msra.mxu0 %v1604
    %1636 = vmatprep.subr.mxu0 0.0
    %1637 = vmatpush1.msra.mxu0 %v1605
    %1638 = vmatprep.subr.mxu0 0.0
    %1639 = vmatpush1.msra.mxu0 %v1606
    %1640 = vmatprep.subr.mxu0 0.0
    %1641 = vmatpush1.msra.mxu0 %v1607
    %1642 = vmatprep.subr.mxu0 0.0
    %1643 = vmatpush1.msra.mxu0 %v1608
    %1644 = vmatprep.subr.mxu0 0.0
    %1645 = vmatpush1.msra.mxu0 %v1609
    %1646 = vmatprep.subr.mxu0 0.0
    %1647 = vmatpush1.msra.mxu0 %v1610
    %1648 = vmatprep.subr.mxu0 0.0
    %1649 = vmatpush1.msra.mxu0 %v1611
    %1650 = vmatprep.subr.mxu0 0.0
    %1651 = vmatpush1.msra.mxu0 %v1612
    %1652 = vmatprep.subr.mxu0 0.0
    %1653 = vmatpush1.msra.mxu0 0.0
    %1654 = vmatprep.subr.mxu0 0.0
    %1655 = vmatpush1.msra.mxu0 0.0
    %1656 = vmatprep.subr.mxu0 0.0
    %1657 = vmatpush1.msra.mxu0 0.0
    %1658 = vmatprep.subr.mxu0 0.0
    %1659 = vmatpush1.msra.mxu0 0.0
    %1660 = vmatprep.subr.mxu0 0.0
    %1661 = vmatpush1.msra.mxu0 0.0
    %1662 = vmatprep.subr.mxu0 0.0
    %1663 = vmatpush1.msra.mxu0 0.0
    %1664 = vmatprep.subr.mxu0 0.0
    %1665 = vmatpush1.msra.mxu0 0.0
    %1666 = vmatprep.subr.mxu0 0.0
    %1667 = vmatpush1.msra.mxu0 0.0
    %1668 = vmatprep.subr.mxu0 0.0
    %1669 = vmatpush1.msra.mxu0 0.0
    %1670 = vmatprep.subr.mxu0 0.0
    %1671 = vmatpush1.msra.mxu0 0.0
    %1672 = vmatprep.subr.mxu0 0.0
    %1673 = vmatpush1.msra.mxu0 0.0
    %1674 = vmatprep.subr.mxu0 0.0
    %1675 = vmatpush1.msra.mxu0 0.0
    %1676 = vmatprep.subr.mxu0 0.0
    %1677 = vmatpush1.msra.mxu0 0.0
    %1678 = vmatprep.subr.mxu0 0.0
    %1679 = vmatpush1.msra.mxu0 0.0
    %1680 = vmatprep.subr.mxu0 0.0
    %1681 = vmatpush1.msra.mxu0 0.0
    %1682 = vmatprep.subr.mxu0 0.0
    %1683 = vmatpush1.msra.mxu0 0.0
    %1684 = vmatprep.mubr.f32.mxu0 0.0
    %1685 = vmatmul.mubr.f32.gmra.mrb[0].mxu0 %v1592
    %v1686 = vpop.f32.mrb[0].mxu0
    %v1687 = vadd.f32 %v1618, %v1686
    %v1688 = vpop.f32.mrb[0].mxu0
    %1689 = vdwg.mxu0
    %1690 = vst [vmem:[%s7] sm:$0xff] %v1687
  $region37: #{my_gru_forward.1} parent=0 // pred_fallthru
    _
  // Predicated region
  $region38: #{my_gru_forward.1} parent=0 // pred_check
    _
  $region39: #{my_gru_forward.1} parent=0 // pred_check_branch
    %1692 = sbr.rel (0) target = $region41
  $region40: #{my_gru_forward.1} parent=0 // pred_region
    _
  $region41: #{my_gru_forward.1} parent=0 // pred_fallthru
    _
  // Predicated region
  $region42: #{my_gru_forward.1} parent=0 // pred_check
    _
  $region43: #{my_gru_forward.1} parent=0 // pred_check_branch
    %1694 = sbr.rel (0) target = $region45
  $region44: #{my_gru_forward.1} parent=0 // pred_region
    _
  $region45: #{my_gru_forward.1} parent=0 // pred_fallthru
    _

</llo_original>
